<compile_context>
chip_gen: v7x
topology: tpu7x:2x2x1
jax: 0.10.0
libtpu: 0.0.40
codegen_flags: <defaults>
</compile_context>

<pallas_src>
import functools

import jax
import jax.numpy as jnp
from jax import lax
from jax.experimental import pallas as pl
from jax.experimental.pallas import tpu as pltpu

VMEM = pl.BlockSpec(memory_space=pltpu.MemorySpace.VMEM)
SMEM = pl.BlockSpec(memory_space=pltpu.MemorySpace.SMEM)
VMEM_LIMIT = 32 * 1024 * 1024   # explicit scoped-VMEM limit (v5e default is 16 MiB)


def _round_up(x, m):
    return ((x + m - 1) // m) * m


def _bf16_eup_supported():
    # bf16 EUP (exp) only on v6e / v7x; v5e (and older) lack bf16 EUP/VPU.
    try:
        kind = jax.devices()[0].device_kind.lower()
    except Exception:
        return False
    return ("v6" in kind) or ("v7" in kind)


_USE_BF16_EXP = _bf16_eup_supported()


def _pick_batch_chunk(b_pad):
    """Largest multiple-of-8 chunk that divides b_pad and gives >=2 chunks
    (so the 'parallel' batch axis can feed both v7x TensorCores)."""
    for c in range(b_pad - 8, 7, -8):
        if b_pad % c == 0:
            return c
    return b_pad


# ----------------------------- Pallas kernels -----------------------------

def gru_encoder_kernel(x_ref, len_ref, wi_ref, wh_ref, bi_ref, bh_ref,
                       hT_ref, h_scr, gi_scr):
    """Single-layer unidirectional GRU (PyTorch gate order r,z,n).
    grid = (batch_chunks [parallel], time_chunks [arbitrary]).
    x block: [Tc, Bc, E] bf16.  Hidden carried in h_scr across time chunks.
    Emulates pack_padded_sequence: length mask folded into the update gate."""
    tc = pl.program_id(1)
    nt = pl.num_programs(1)
    Tc, Bc, E = x_ref.shape
    H = hT_ref.shape[-1]

    @pl.when(tc == 0)
    def _():
        h_scr[...] = jnp.zeros_like(h_scr)

    # Hoisted input-to-hidden projection for the whole time chunk (one MXU
    # matmul with M = Tc*Bc instead of Tc small ones).
    gi_scr[...] = jnp.dot(x_ref[...].reshape(Tc * Bc, E), wi_ref[...],
                          preferred_element_type=jnp.float32) + bi_ref[...]
    lens = len_ref[...]                                              # [Bc, 1]
    t0 = tc * Tc

    def step(t, h):
        gi = gi_scr[pl.ds(pl.multiple_of(t * Bc, 8), Bc), :]         # [Bc, 3H]
        gh = jnp.dot(h.astype(jnp.bfloat16), wh_ref[...],
                     preferred_element_type=jnp.float32) + bh_ref[...]
        i_r, i_z, i_n = gi[:, :H], gi[:, H:2 * H], gi[:, 2 * H:]
        h_r, h_z, h_n = gh[:, :H], gh[:, H:2 * H], gh[:, 2 * H:]
        r = jax.nn.sigmoid(i_r + h_r)
        z = jax.nn.sigmoid(i_z + h_z)
        n = jnp.tanh(i_n + r * h_n)
        # fold the length mask into the update gate: z_eff=1 freezes h.
        valid = (t0 + t) < lens                                      # [Bc, 1]
        z_eff = jnp.where(valid, z, 1.0)
        return (1.0 - z_eff) * n + z_eff * h

    h_scr[...] = lax.fori_loop(0, Tc, step, h_scr[...], unroll=True)

    @pl.when(tc == nt - 1)
    def _():
        hT_ref[...] = h_scr[...]


def cond_gru_kernel(x_ref, h0_ref, ctx_ref, wi_ref, bi_ref, wh_ref, bh_ref,
                    wp_ref, bp_ref, out_ref, h_scr, gi_scr):
    """ConditionalGRU recurrence, gridded like the encoder.
    x block: [Tc, Bc, E] bf16; out block: [Tc, Bc, H] bf16 (all hiddens)."""
    tc = pl.program_id(1)
    Tc, Bc, E = x_ref.shape
    H = h0_ref.shape[-1]

    @pl.when(tc == 0)
    def _():
        h_scr[...] = h0_ref[...]

    gi_scr[...] = jnp.dot(x_ref[...].reshape(Tc * Bc, E), wi_ref[...],
                          preferred_element_type=jnp.float32) + bi_ref[...]
    # peep gate only depends on ctx -> one small matmul per chunk.
    peep = jnp.dot(ctx_ref[...].astype(jnp.bfloat16), wp_ref[...],
                   preferred_element_type=jnp.float32) + bp_ref[...]
    p_r, p_i, p_n = peep[:, :H], peep[:, H:2 * H], peep[:, 2 * H:]

    def step(t, h):
        gi = gi_scr[pl.ds(pl.multiple_of(t * Bc, 8), Bc), :]
        gh = jnp.dot(h.astype(jnp.bfloat16), wh_ref[...],
                     preferred_element_type=jnp.float32) + bh_ref[...]
        i_r, i_i, i_n = gi[:, :H], gi[:, H:2 * H], gi[:, 2 * H:]
        h_r, h_i, h_n = gh[:, :H], gh[:, H:2 * H], gh[:, 2 * H:]
        resetgate = jax.nn.sigmoid(i_r + h_r + p_r)
        inputgate = jax.nn.sigmoid(i_i + h_i + p_i)
        newgate = jnp.tanh(i_n + resetgate * h_n + p_n)
        hy = newgate + inputgate * (h - newgate)
        out_ref[t] = hy.astype(out_ref.dtype)
        return hy

    h_scr[...] = lax.fori_loop(0, Tc, step, h_scr[...], unroll=True)


def ce_proj_kernel(x_ref, w_ref, b_ref, lbl_ref, valid_ref, out_ref,
                   m_scr, s_scr, l_scr, *, use_bf16_exp):
    """Tiled decoder2vocab projection + cross-entropy with online logsumexp.
    grid = (row tiles [parallel], vocab tiles [arbitrary/reduction])."""
    v = pl.program_id(1)
    nv = pl.num_programs(1)

    @pl.when(v == 0)
    def _():
        m_scr[...] = jnp.full(m_scr.shape, -jnp.inf, jnp.float32)
        s_scr[...] = jnp.zeros(s_scr.shape, jnp.float32)
        l_scr[...] = jnp.zeros(l_scr.shape, jnp.float32)

    logits = jnp.dot(x_ref[...], w_ref[...],
                     preferred_element_type=jnp.float32) + b_ref[...]
    TN, TV = logits.shape

    m_old = m_scr[...]
    m_new = jnp.maximum(m_old, jnp.max(logits, axis=-1, keepdims=True))
    shifted = logits - m_new
    if use_bf16_exp:     # bf16 EUP on v6e/v7x; accumulation stays f32.
        e = jnp.exp(shifted.astype(jnp.bfloat16)).astype(jnp.float32)
    else:
        e = jnp.exp(shifted)
    s_scr[...] = (s_scr[...] * jnp.exp(m_old - m_new)
                  + jnp.sum(e, axis=-1, keepdims=True))
    m_scr[...] = m_new

    col = v * TV + lax.broadcasted_iota(jnp.int32, (TN, TV), 1)
    l_scr[...] += jnp.sum(jnp.where(col == lbl_ref[...], logits, 0.0),
                          axis=-1, keepdims=True)

    @pl.when(v == nv - 1)
    def _():
        lse = m_scr[...] + jnp.log(s_scr[...])
        out_ref[...] = (lse - l_scr[...]) * valid_ref[...]


def nli_head_kernel(h1_ref, h2_ref, w1_ref, b1_ref, w2_ref, b2_ref,
                    labels_ref, loss_ref):
    """features=[h1,h2,|h1-h2|,h1*h2] -> Linear(4H,512) -> ReLU -> Linear(512,3)
    -> CE.  The concat is replaced by 4 partial matmuls on row blocks of W1."""
    h1 = h1_ref[...]
    h2 = h2_ref[...]
    H = h1.shape[-1]

    def mm(x, w):
        return jnp.dot(x.astype(jnp.bfloat16), w,
                       preferred_element_type=jnp.float32)

    hid = (mm(h1, w1_ref[:H, :])
           + mm(h2, w1_ref[H:2 * H, :])
           + mm(jnp.abs(h1 - h2), w1_ref[2 * H:3 * H, :])
           + mm(h1 * h2, w1_ref[3 * H:, :])
           + b1_ref[...])
    hid = jnp.maximum(hid, 0.0)
    logits = mm(hid, w2_ref[...]) + b2_ref[...]

    N, C = logits.shape
    m = jnp.max(logits, axis=-1, keepdims=True)
    lse = m + jnp.log(jnp.sum(jnp.exp(logits - m), axis=-1, keepdims=True))
    col = lax.broadcasted_iota(jnp.int32, (N, C), 1)
    lbl = jnp.sum(jnp.where(col == labels_ref[...], logits, 0.0),
                  axis=-1, keepdims=True)
    loss_ref[0, 0] = jnp.mean(lse - lbl)


# ------------------------------ JAX wrappers -------------------------------

def run_gru_encoder(x_tbe, lengths, wi, wh, bi, bh, *, t_chunk=8):
    """x_tbe: [T, B, E] bf16 time-major; lengths: [B] int.  Returns [B, H] f32."""
    T, B, E = x_tbe.shape
    H = wh.shape[0]
    Tc = t_chunk
    T_pad = _round_up(T, Tc)
    B_pad = _round_up(B, 8)
    Bc = _pick_batch_chunk(B_pad)

    x_p = jnp.pad(x_tbe, ((0, T_pad - T), (0, B_pad - B), (0, 0)))
    len_p = jnp.pad(lengths.astype(jnp.int32), (0, B_pad - B)).reshape(-1, 1)

    grid = (B_pad // Bc, T_pad // Tc)
    h = pl.pallas_call(
        gru_encoder_kernel,
        out_shape=jax.ShapeDtypeStruct((B_pad, H), jnp.float32),
        grid_spec=pltpu.PrefetchScalarGridSpec(
            num_scalar_prefetch=0, grid=grid,
            in_specs=[pl.BlockSpec((Tc, Bc, E), lambda b, t: (t, b, 0)),
                      pl.BlockSpec((Bc, 1), lambda b, t: (b, 0)),
                      pl.BlockSpec((E, 3 * H), lambda b, t: (0, 0)),
                      pl.BlockSpec((H, 3 * H), lambda b, t: (0, 0)),
                      pl.BlockSpec((1, 3 * H), lambda b, t: (0, 0)),
                      pl.BlockSpec((1, 3 * H), lambda b, t: (0, 0))],
            out_specs=pl.BlockSpec((Bc, H), lambda b, t: (b, 0)),
            scratch_shapes=[pltpu.VMEM((Bc, H), jnp.float32),
                            pltpu.VMEM((Tc * Bc, 3 * H), jnp.float32)]),
        compiler_params=pltpu.CompilerParams(
            dimension_semantics=("parallel", "arbitrary"),
            vmem_limit_bytes=VMEM_LIMIT),
    )(x_p, len_p, wi, wh, bi, bh)
    return h[:B]


def run_cond_gru(x_tbe, h0, ctx, wi, bi, wh, bh, wp, bp, *, t_chunk=8):
    """x_tbe: [T, B, E] bf16.  Returns all hiddens, padded: [T_pad, B_pad, H] bf16."""
    T, B, E = x_tbe.shape
    H = h0.shape[-1]
    Tc = t_chunk
    T_pad = _round_up(T, Tc)
    B_pad = _round_up(B, 8)
    Bc = _pick_batch_chunk(B_pad)

    x_p = jnp.pad(x_tbe, ((0, T_pad - T), (0, B_pad - B), (0, 0)))
    h0_p = jnp.pad(h0, ((0, B_pad - B), (0, 0)))
    ctx_p = jnp.pad(ctx, ((0, B_pad - B), (0, 0)))

    grid = (B_pad // Bc, T_pad // Tc)
    return pl.pallas_call(
        cond_gru_kernel,
        out_shape=jax.ShapeDtypeStruct((T_pad, B_pad, H), jnp.bfloat16),
        grid_spec=pltpu.PrefetchScalarGridSpec(
            num_scalar_prefetch=0, grid=grid,
            in_specs=[pl.BlockSpec((Tc, Bc, E), lambda b, t: (t, b, 0)),
                      pl.BlockSpec((Bc, H), lambda b, t: (b, 0)),
                      pl.BlockSpec((Bc, H), lambda b, t: (b, 0)),
                      pl.BlockSpec((E, 3 * H), lambda b, t: (0, 0)),
                      pl.BlockSpec((1, 3 * H), lambda b, t: (0, 0)),
                      pl.BlockSpec((H, 3 * H), lambda b, t: (0, 0)),
                      pl.BlockSpec((1, 3 * H), lambda b, t: (0, 0)),
                      pl.BlockSpec((H, 3 * H), lambda b, t: (0, 0)),
                      pl.BlockSpec((1, 3 * H), lambda b, t: (0, 0))],
            out_specs=pl.BlockSpec((Tc, Bc, H), lambda b, t: (t, b, 0)),
            scratch_shapes=[pltpu.VMEM((Bc, H), jnp.float32),
                            pltpu.VMEM((Tc * Bc, 3 * H), jnp.float32)]),
        compiler_params=pltpu.CompilerParams(
            dimension_semantics=("parallel", "arbitrary"),
            vmem_limit_bytes=VMEM_LIMIT),
    )(x_p, h0_p, ctx_p, wi, bi, wh, bh, wp, bp)


def run_linear_ce(x, w, b, labels, valid, denom):
    """x: [N, H] bf16; w: [H, V] bf16; b: [1, V] f32; labels/valid: [N].
    Returns sum(per-row CE * valid) / denom (matches F.cross_entropy mean)."""
    N, H = x.shape
    V = b.shape[-1]
    TILE_V = min(2048, _round_up(V, 128))
    V_pad = _round_up(V, TILE_V)
    TILE_N = min(512, _round_up(N, 8))
    N_pad = _round_up(N, TILE_N)

    w_p = jnp.pad(w, ((0, 0), (0, V_pad - V)))
    b_p = jnp.pad(b, ((0, 0), (0, V_pad - V)), constant_values=-1e30)
    x_p = jnp.pad(x, ((0, N_pad - N), (0, 0)))
    lbl = jnp.pad(labels.astype(jnp.int32), (0, N_pad - N)).reshape(-1, 1)
    vld = jnp.pad(valid.astype(jnp.float32), (0, N_pad - N)).reshape(-1, 1)

    grid = (N_pad // TILE_N, V_pad // TILE_V)
    kernel = functools.partial(ce_proj_kernel, use_bf16_exp=_USE_BF16_EXP)
    per_row = pl.pallas_call(
        kernel,
        out_shape=jax.ShapeDtypeStruct((N_pad, 1), jnp.float32),
        grid_spec=pltpu.PrefetchScalarGridSpec(
            num_scalar_prefetch=0, grid=grid,
            in_specs=[pl.BlockSpec((TILE_N, H), lambda n, v: (n, 0)),
                      pl.BlockSpec((H, TILE_V), lambda n, v: (0, v),
                                   pipeline_mode=pl.Buffered(3)),
                      pl.BlockSpec((1, TILE_V), lambda n, v: (0, v)),
                      pl.BlockSpec((TILE_N, 1), lambda n, v: (n, 0)),
                      pl.BlockSpec((TILE_N, 1), lambda n, v: (n, 0))],
            out_specs=pl.BlockSpec((TILE_N, 1), lambda n, v: (n, 0)),
            scratch_shapes=[pltpu.VMEM((TILE_N, 1), jnp.float32)] * 3),
        compiler_params=pltpu.CompilerParams(
            dimension_semantics=("parallel", "arbitrary"),
            vmem_limit_bytes=VMEM_LIMIT),
    )(x_p, w_p, b_p, lbl, vld)
    return jnp.sum(per_row) / denom


def run_nli_head(h1, h2, w1, b1, w2, b2, labels):
    loss = pl.pallas_call(
        nli_head_kernel,
        out_shape=jax.ShapeDtypeStruct((1, 1), jnp.float32),
        in_specs=[VMEM] * 7,
        out_specs=SMEM,
    )(h1, h2, w1, b1, w2, b2, labels.reshape(-1, 1).astype(jnp.int32))
    return loss[0, 0]


# ------------------------------- Model glue --------------------------------

class MultiTaskModelPallas:
    def __init__(self, key, src_vocab_size, src_embed_dim, src_pad_token_id,
                 src_num_layers, src_hidden_dim, trg_vocab_size, trg_embed_dim,
                 trg_pad_token_id, trg_hidden_dim, num_tasks,
                 bidirectional=False, dropout=0.1):
        assert src_num_layers == 1 and not bidirectional, \
            "kernel specializes to a 1-layer unidirectional encoder"
        keys = iter(jax.random.split(key, 8 + 8 * num_tasks))

        def dense(k, fi, fo):
            kw, kb = jax.random.split(k)
            s = 1.0 / float(fi) ** 0.5
            w = jax.random.uniform(kw, (fi, fo), jnp.float32, -s, s)
            b = jax.random.uniform(kb, (1, fo), jnp.float32, -s, s)
            # weights stored bf16 (MXU operands); biases stay f32.
            return w.astype(jnp.bfloat16), b

        # embeddings stored bf16 (halves gather + activation DMA traffic).
        self.src_embedding = (jax.random.normal(
            next(keys), (src_vocab_size, src_embed_dim), jnp.float32) * 0.1
        ).at[src_pad_token_id].set(0.0).astype(jnp.bfloat16)

        H = src_hidden_dim
        self.enc_wi, self.enc_bi = dense(next(keys), src_embed_dim, 3 * H)
        self.enc_wh, self.enc_bh = dense(next(keys), H, 3 * H)

        self.trg_embedding, self.decoders, self.decoder2vocab = [], [], []
        for _ in range(num_tasks):
            emb = (jax.random.normal(
                next(keys), (trg_vocab_size, trg_embed_dim), jnp.float32) * 0.1
            ).at[trg_pad_token_id].set(0.0).astype(jnp.bfloat16)
            self.trg_embedding.append(emb)
            wi, bi = dense(next(keys), trg_embed_dim, 3 * trg_hidden_dim)
            wh, bh = dense(next(keys), trg_hidden_dim, 3 * trg_hidden_dim)
            wp, bp = dense(next(keys), trg_hidden_dim, 3 * trg_hidden_dim)
            self.decoders.append((wi, bi, wh, bh, wp, bp))
            self.decoder2vocab.append(dense(next(keys), trg_hidden_dim, trg_vocab_size))

        self.nli_fc1 = dense(next(keys), 4 * src_hidden_dim, 512)
        self.nli_fc2 = dense(next(keys), 512, 3)

    @staticmethod
    def _embed_time_major(table, ids_bt):
        """Gather bf16 embeddings into the time-major [T, B, E] layout the
        recurrence kernels consume (no float-tensor transpose afterwards)."""
        # TODO(synk): fuse the gather into the recurrence kernels via
        # PrefetchScalarGridSpec + pl.Element row-gather on the embedding table.
        return jnp.take(table, jnp.transpose(ids_bt, (1, 0)), axis=0)

    def forward(self, batch, task_idx=None):
        # TODO(synk): dropout layers (enc_drp, decoder dropout, NLI Dropout(0.3))
        # are treated as identity (eval mode) for determinism.
        if batch['type'] == 'nli':
            B = batch['sent1'].shape[0]
            # batch the two encoder passes into ONE recurrence kernel launch.
            ids = jnp.concatenate([batch['sent1'], batch['sent2']], axis=0)
            lens = jnp.concatenate([batch['sent1_length'],
                                    batch['sent2_length']], axis=0)
            x = self._embed_time_major(self.src_embedding, ids)      # [S, 2B, E]
            h = run_gru_encoder(x, lens, self.enc_wi, self.enc_wh,
                                self.enc_bi, self.enc_bh)            # [2B, H]
            h1, h2 = h[:B], h[B:]
            (w1, b1), (w2, b2) = self.nli_fc1, self.nli_fc2
            return run_nli_head(h1, h2, w1, b1, w2, b2, batch['label'])
        else:
            B, T = batch['trg_output_ids'].shape
            src_x = self._embed_time_major(self.src_embedding, batch['src'])
            src_ht = run_gru_encoder(src_x, batch['src_length'],
                                     self.enc_wi, self.enc_wh,
                                     self.enc_bi, self.enc_bh)       # [B, H] f32
            trg_x = self._embed_time_major(self.trg_embedding[task_idx],
                                           batch['trg_input_ids'])   # [T, B, E]
            trg_h = run_cond_gru(trg_x, src_ht, src_ht,
                                 *self.decoders[task_idx])   # [T_pad, B_pad, H] bf16
            T_pad, B_pad, H = trg_h.shape
            w, b = self.decoder2vocab[task_idx]
            # labels / validity in the same padded time-major order as trg_h
            # rows; mean CE is permutation invariant so the value matches PyTorch.
            lbl_tb = jnp.transpose(batch['trg_output_ids'], (1, 0)).astype(jnp.int32)
            lbl_pad = jnp.zeros((T_pad, B_pad), jnp.int32).at[:T, :B].set(lbl_tb)
            valid = jnp.zeros((T_pad, B_pad), jnp.float32).at[:T, :B].set(1.0)
            return run_linear_ce(trg_h.reshape(T_pad * B_pad, H), w, b,
                                 lbl_pad.reshape(-1), valid.reshape(-1),
                                 denom=float(T * B))


# ---------------------------------- main ------------------------------------

if __name__ == "__main__":
    key = jax.random.PRNGKey(0)
    kparams, kdata = jax.random.split(key)

    # lane/sublane-friendly small shapes: B multiple of 8, hidden = 128.
    B, S, T = 8, 12, 8
    SRC_VOCAB, TRG_VOCAB = 100, 1000
    SRC_EMB, TRG_EMB, HID = 64, 64, 128

    model = MultiTaskModelPallas(
        kparams, src_vocab_size=SRC_VOCAB, src_embed_dim=SRC_EMB,
        src_pad_token_id=0, src_num_layers=1, src_hidden_dim=HID,
        trg_vocab_size=TRG_VOCAB, trg_embed_dim=TRG_EMB, trg_pad_token_id=0,
        trg_hidden_dim=HID, num_tasks=2)

    kd = iter(jax.random.split(kdata, 16))

    # seq2seq branch
    src_len = jnp.array([S, S - 3, S - 1, S - 5, S, S - 2, S - 4, S - 6],
                        dtype=jnp.int32)
    src = jax.random.randint(next(kd), (B, S), 1, SRC_VOCAB, dtype=jnp.int32)
    src = jnp.where(jnp.arange(S)[None, :] < src_len[:, None], src, 0)
    trg_in = jax.random.randint(next(kd), (B, T), 1, TRG_VOCAB, dtype=jnp.int32)
    trg_out = jax.random.randint(next(kd), (B, T), 1, TRG_VOCAB, dtype=jnp.int32)
    s2s_batch = {'type': 'seq2seq', 'src': src, 'src_length': src_len,
                 'trg_input_ids': trg_in, 'trg_output_ids': trg_out}
    loss_s2s = model.forward(s2s_batch, task_idx=0)

    # nli branch
    s1_len = jnp.array([S, S - 4, S - 1, S - 2, S - 6, S, S - 3, S - 5],
                       dtype=jnp.int32)
    s2_len = jnp.array([S - 2, S, S - 5, S - 1, S, S - 3, S - 6, S - 4],
                       dtype=jnp.int32)
    sent1 = jax.random.randint(next(kd), (B, S), 1, SRC_VOCAB, dtype=jnp.int32)
    sent1 = jnp.where(jnp.arange(S)[None, :] < s1_len[:, None], sent1, 0)
    sent2 = jax.random.randint(next(kd), (B, S), 1, SRC_VOCAB, dtype=jnp.int32)
    sent2 = jnp.where(jnp.arange(S)[None, :] < s2_len[:, None], sent2, 0)
    label = jax.random.randint(next(kd), (B,), 0, 3, dtype=jnp.int32)
    nli_batch = {'type': 'nli', 'sent1': sent1, 'sent2': sent2,
                 'sent1_length': s1_len, 'sent2_length': s2_len, 'label': label}
    loss_nli = model.forward(nli_batch)

    jax.block_until_ready((loss_s2s, loss_nli))
    assert jnp.isfinite(loss_s2s) and jnp.isfinite(loss_nli)
    print("KERNEL_OK")
</pallas_src>

<mosaic_0001>
module attributes {stable_mosaic.version = 11 : i64} {
  func.func @gru_encoder_kernel(%arg0: i32, %arg1: i32, %arg2: memref<8x8x64xbf16, #tpu.memory_space<vmem>>, %arg3: memref<8x1xi32, #tpu.memory_space<vmem>>, %arg4: memref<64x384xbf16, #tpu.memory_space<vmem>>, %arg5: memref<128x384xbf16, #tpu.memory_space<vmem>>, %arg6: memref<1x384xf32, #tpu.memory_space<vmem>>, %arg7: memref<1x384xf32, #tpu.memory_space<vmem>>, %arg8: memref<8x128xf32, #tpu.memory_space<vmem>>, %arg9: memref<8x128xf32, #tpu.memory_space<vmem>>, %arg10: memref<64x384xf32, #tpu.memory_space<vmem>>) attributes {dimension_semantics = [#tpu.dimension_semantics<parallel>, #tpu.dimension_semantics<arbitrary>], iteration_bounds = array<i64: 1, 2>, scalar_prefetch = 0 : i64, scratch_operands = 2 : i64, tpu.core_type = #tpu.core_type<tc>, window_params = [{transform_indices = @transform_0, window_bounds = array<i64: 8, 8, 64>}, {transform_indices = @transform_1, window_bounds = array<i64: 8, 1>}, {pipeline_mode = #tpu.pipeline_mode<synchronous>, transform_indices = @transform_2, window_bounds = array<i64: 64, 384>}, {pipeline_mode = #tpu.pipeline_mode<synchronous>, transform_indices = @transform_3, window_bounds = array<i64: 128, 384>}, {pipeline_mode = #tpu.pipeline_mode<synchronous>, transform_indices = @transform_4, window_bounds = array<i64: 1, 384>}, {pipeline_mode = #tpu.pipeline_mode<synchronous>, transform_indices = @transform_5, window_bounds = array<i64: 1, 384>}, {transform_indices = @transform_6, window_bounds = array<i64: 8, 128>}]} {
    %c0_i32 = arith.constant 0 : i32
    %0 = arith.cmpi eq, %arg1, %c0_i32 : i32
    %1 = arith.extui %0 : i1 to i32
    %c0_i32_0 = arith.constant 0 : i32
    %2 = arith.cmpi ne, %1, %c0_i32_0 : i32
    scf.if %2 {
      %cst_107 = arith.constant 0.000000e+00 : f32
      %362 = vector.broadcast %cst_107 : f32 to vector<8x128xf32>
      %c0_108 = arith.constant 0 : index
      %c0_109 = arith.constant 0 : index
      %363 = vector.load %arg9[%c0_108, %c0_109] : memref<8x128xf32, #tpu.memory_space<vmem>>, vector<8x128xf32>
      tpu.vector_store %arg9[%c0_108, %c0_109], %362 {strides = array<i32>} : memref<8x128xf32, #tpu.memory_space<vmem>>, vector<8x128xf32>,
    } else {
    }
    %c0 = arith.constant 0 : index
    %c0_1 = arith.constant 0 : index
    %c0_2 = arith.constant 0 : index
    %3 = vector.load %arg2[%c0, %c0_1, %c0_2] : memref<8x8x64xbf16, #tpu.memory_space<vmem>>, vector<8x8x64xbf16>
    %4 = vector.shape_cast %3 : vector<8x8x64xbf16> to vector<64x64xbf16>
    %c0_3 = arith.constant 0 : index
    %c0_4 = arith.constant 0 : index
    %5 = vector.load %arg4[%c0_3, %c0_4] : memref<64x384xbf16, #tpu.memory_space<vmem>>, vector<64x384xbf16>
    %cst = arith.constant dense<0.000000e+00> : vector<64x384xf32>
    %6 = tpu.matmul %4, %5, %cst {dimension_numbers = #tpu.dot_dimension_numbers<[1], [0], [0], [1], [0, 0, 1, 1], [], []>} : vector<64x64xbf16>, vector<64x384xbf16>, vector<64x384xf32> -> vector<64x384xf32>
    %c0_5 = arith.constant 0 : index
    %c0_6 = arith.constant 0 : index
    %7 = vector.load %arg6[%c0_5, %c0_6] : memref<1x384xf32, #tpu.memory_space<vmem>>, vector<1x384xf32>
    %8 = vector.broadcast %7 : vector<1x384xf32> to vector<64x384xf32>
    %9 = arith.addf %6, %8 : vector<64x384xf32>
    %c0_7 = arith.constant 0 : index
    %c0_8 = arith.constant 0 : index
    %10 = vector.load %arg10[%c0_7, %c0_8] : memref<64x384xf32, #tpu.memory_space<vmem>>, vector<64x384xf32>
    tpu.vector_store %arg10[%c0_7, %c0_8], %9 {strides = array<i32>} : memref<64x384xf32, #tpu.memory_space<vmem>>, vector<64x384xf32>,
    %c0_9 = arith.constant 0 : index
    %c0_10 = arith.constant 0 : index
    %11 = vector.load %arg3[%c0_9, %c0_10] : memref<8x1xi32, #tpu.memory_space<vmem>>, vector<8x1xi32>
    %c8_i32 = arith.constant 8 : i32
    %12 = arith.muli %arg1, %c8_i32 : i32
    %c0_11 = arith.constant 0 : index
    %c0_12 = arith.constant 0 : index
    %13 = vector.load %arg9[%c0_11, %c0_12] : memref<8x128xf32, #tpu.memory_space<vmem>>, vector<8x128xf32>
    %c0_i32_13 = arith.constant 0 : i32
    %c8_i32_14 = arith.constant 8 : i32
    %14 = arith.muli %c0_i32_13, %c8_i32_14 : i32
    %15 = tpu.assume_multiple %14, 8 : i32
    %16 = arith.index_cast %15 : i32 to index
    %c0_15 = arith.constant 0 : index
    %17 = vector.load %arg10[%16, %c0_15] : memref<64x384xf32, #tpu.memory_space<vmem>>, vector<8x384xf32>
    %18 = arith.truncf %13 : vector<8x128xf32> to vector<8x128xbf16>
    %c0_16 = arith.constant 0 : index
    %c0_17 = arith.constant 0 : index
    %19 = vector.load %arg5[%c0_16, %c0_17] : memref<128x384xbf16, #tpu.memory_space<vmem>>, vector<128x384xbf16>
    %cst_18 = arith.constant dense<0.000000e+00> : vector<8x384xf32>
    %20 = tpu.matmul %18, %19, %cst_18 {dimension_numbers = #tpu.dot_dimension_numbers<[1], [0], [0], [1], [0, 0, 1, 1], [], []>} : vector<8x128xbf16>, vector<128x384xbf16>, vector<8x384xf32> -> vector<8x384xf32>
    %c0_19 = arith.constant 0 : index
    %c0_20 = arith.constant 0 : index
    %21 = vector.load %arg7[%c0_19, %c0_20] : memref<1x384xf32, #tpu.memory_space<vmem>>, vector<1x384xf32>
    %22 = vector.broadcast %21 : vector<1x384xf32> to vector<8x384xf32>
    %23 = arith.addf %20, %22 : vector<8x384xf32>
    %24 = vector.extract_strided_slice %17 {offsets = [0, 0], sizes = [8, 128], strides = [1, 1]} : vector<8x384xf32> to vector<8x128xf32>
    %25 = vector.extract_strided_slice %17 {offsets = [0, 128], sizes = [8, 128], strides = [1, 1]} : vector<8x384xf32> to vector<8x128xf32>
    %26 = vector.extract_strided_slice %17 {offsets = [0, 256], sizes = [8, 128], strides = [1, 1]} : vector<8x384xf32> to vector<8x128xf32>
    %27 = vector.extract_strided_slice %23 {offsets = [0, 0], sizes = [8, 128], strides = [1, 1]} : vector<8x384xf32> to vector<8x128xf32>
    %28 = vector.extract_strided_slice %23 {offsets = [0, 128], sizes = [8, 128], strides = [1, 1]} : vector<8x384xf32> to vector<8x128xf32>
    %29 = vector.extract_strided_slice %23 {offsets = [0, 256], sizes = [8, 128], strides = [1, 1]} : vector<8x384xf32> to vector<8x128xf32>
    %30 = arith.addf %24, %27 : vector<8x128xf32>
    %31 = arith.negf %30 : vector<8x128xf32>
    %32 = math.exp %31 : vector<8x128xf32>
    %cst_21 = arith.constant 1.000000e+00 : f32
    %33 = vector.broadcast %cst_21 : f32 to vector<8x128xf32>
    %34 = arith.addf %33, %32 : vector<8x128xf32>
    %35 = arith.divf %33, %34 : vector<8x128xf32>
    %36 = arith.addf %25, %28 : vector<8x128xf32>
    %37 = arith.negf %36 : vector<8x128xf32>
    %38 = math.exp %37 : vector<8x128xf32>
    %cst_22 = arith.constant 1.000000e+00 : f32
    %39 = vector.broadcast %cst_22 : f32 to vector<8x128xf32>
    %40 = arith.addf %39, %38 : vector<8x128xf32>
    %41 = arith.divf %39, %40 : vector<8x128xf32>
    %42 = arith.mulf %35, %29 : vector<8x128xf32>
    %43 = arith.addf %26, %42 : vector<8x128xf32>
    %44 = math.tanh %43 : vector<8x128xf32>
    %45 = arith.addi %12, %c0_i32_13 : i32
    %46 = vector.broadcast %45 : i32 to vector<8x1xi32>
    %47 = arith.cmpi slt, %46, %11 : vector<8x1xi32>
    %cst_23 = arith.constant 1.000000e+00 : f32
    %48 = vector.shape_cast %47 : vector<8x1xi1> to vector<8x1xi1>
    %49 = vector.broadcast %48 : vector<8x1xi1> to vector<8x128xi1>
    %50 = vector.broadcast %cst_23 : f32 to vector<8x128xf32>
    %51 = arith.select %49, %41, %50 : vector<8x128xi1>, vector<8x128xf32>
    %cst_24 = arith.constant 1.000000e+00 : f32
    %52 = vector.broadcast %cst_24 : f32 to vector<8x128xf32>
    %53 = arith.subf %52, %51 : vector<8x128xf32>
    %54 = arith.mulf %53, %44 : vector<8x128xf32>
    %55 = arith.mulf %51, %13 : vector<8x128xf32>
    %56 = arith.addf %54, %55 : vector<8x128xf32>
    %c1_i32 = arith.constant 1 : i32
    %c8_i32_25 = arith.constant 8 : i32
    %57 = arith.muli %c1_i32, %c8_i32_25 : i32
    %58 = tpu.assume_multiple %57, 8 : i32
    %59 = arith.index_cast %58 : i32 to index
    %c0_26 = arith.constant 0 : index
    %60 = vector.load %arg10[%59, %c0_26] : memref<64x384xf32, #tpu.memory_space<vmem>>, vector<8x384xf32>
    %61 = arith.truncf %56 : vector<8x128xf32> to vector<8x128xbf16>
    %c0_27 = arith.constant 0 : index
    %c0_28 = arith.constant 0 : index
    %62 = vector.load %arg5[%c0_27, %c0_28] : memref<128x384xbf16, #tpu.memory_space<vmem>>, vector<128x384xbf16>
    %cst_29 = arith.constant dense<0.000000e+00> : vector<8x384xf32>
    %63 = tpu.matmul %61, %62, %cst_29 {dimension_numbers = #tpu.dot_dimension_numbers<[1], [0], [0], [1], [0, 0, 1, 1], [], []>} : vector<8x128xbf16>, vector<128x384xbf16>, vector<8x384xf32> -> vector<8x384xf32>
    %c0_30 = arith.constant 0 : index
    %c0_31 = arith.constant 0 : index
    %64 = vector.load %arg7[%c0_30, %c0_31] : memref<1x384xf32, #tpu.memory_space<vmem>>, vector<1x384xf32>
    %65 = vector.broadcast %64 : vector<1x384xf32> to vector<8x384xf32>
    %66 = arith.addf %63, %65 : vector<8x384xf32>
    %67 = vector.extract_strided_slice %60 {offsets = [0, 0], sizes = [8, 128], strides = [1, 1]} : vector<8x384xf32> to vector<8x128xf32>
    %68 = vector.extract_strided_slice %60 {offsets = [0, 128], sizes = [8, 128], strides = [1, 1]} : vector<8x384xf32> to vector<8x128xf32>
    %69 = vector.extract_strided_slice %60 {offsets = [0, 256], sizes = [8, 128], strides = [1, 1]} : vector<8x384xf32> to vector<8x128xf32>
    %70 = vector.extract_strided_slice %66 {offsets = [0, 0], sizes = [8, 128], strides = [1, 1]} : vector<8x384xf32> to vector<8x128xf32>
    %71 = vector.extract_strided_slice %66 {offsets = [0, 128], sizes = [8, 128], strides = [1, 1]} : vector<8x384xf32> to vector<8x128xf32>
    %72 = vector.extract_strided_slice %66 {offsets = [0, 256], sizes = [8, 128], strides = [1, 1]} : vector<8x384xf32> to vector<8x128xf32>
    %73 = arith.addf %67, %70 : vector<8x128xf32>
    %74 = arith.negf %73 : vector<8x128xf32>
    %75 = math.exp %74 : vector<8x128xf32>
    %cst_32 = arith.constant 1.000000e+00 : f32
    %76 = vector.broadcast %cst_32 : f32 to vector<8x128xf32>
    %77 = arith.addf %76, %75 : vector<8x128xf32>
    %78 = arith.divf %76, %77 : vector<8x128xf32>
    %79 = arith.addf %68, %71 : vector<8x128xf32>
    %80 = arith.negf %79 : vector<8x128xf32>
    %81 = math.exp %80 : vector<8x128xf32>
    %cst_33 = arith.constant 1.000000e+00 : f32
    %82 = vector.broadcast %cst_33 : f32 to vector<8x128xf32>
    %83 = arith.addf %82, %81 : vector<8x128xf32>
    %84 = arith.divf %82, %83 : vector<8x128xf32>
    %85 = arith.mulf %78, %72 : vector<8x128xf32>
    %86 = arith.addf %69, %85 : vector<8x128xf32>
    %87 = math.tanh %86 : vector<8x128xf32>
    %88 = arith.addi %12, %c1_i32 : i32
    %89 = vector.broadcast %88 : i32 to vector<8x1xi32>
    %90 = arith.cmpi slt, %89, %11 : vector<8x1xi32>
    %cst_34 = arith.constant 1.000000e+00 : f32
    %91 = vector.shape_cast %90 : vector<8x1xi1> to vector<8x1xi1>
    %92 = vector.broadcast %91 : vector<8x1xi1> to vector<8x128xi1>
    %93 = vector.broadcast %cst_34 : f32 to vector<8x128xf32>
    %94 = arith.select %92, %84, %93 : vector<8x128xi1>, vector<8x128xf32>
    %cst_35 = arith.constant 1.000000e+00 : f32
    %95 = vector.broadcast %cst_35 : f32 to vector<8x128xf32>
    %96 = arith.subf %95, %94 : vector<8x128xf32>
    %97 = arith.mulf %96, %87 : vector<8x128xf32>
    %98 = arith.mulf %94, %56 : vector<8x128xf32>
    %99 = arith.addf %97, %98 : vector<8x128xf32>
    %c2_i32 = arith.constant 2 : i32
    %c8_i32_36 = arith.constant 8 : i32
    %100 = arith.muli %c2_i32, %c8_i32_36 : i32
    %101 = tpu.assume_multiple %100, 8 : i32
    %102 = arith.index_cast %101 : i32 to index
    %c0_37 = arith.constant 0 : index
    %103 = vector.load %arg10[%102, %c0_37] : memref<64x384xf32, #tpu.memory_space<vmem>>, vector<8x384xf32>
    %104 = arith.truncf %99 : vector<8x128xf32> to vector<8x128xbf16>
    %c0_38 = arith.constant 0 : index
    %c0_39 = arith.constant 0 : index
    %105 = vector.load %arg5[%c0_38, %c0_39] : memref<128x384xbf16, #tpu.memory_space<vmem>>, vector<128x384xbf16>
    %cst_40 = arith.constant dense<0.000000e+00> : vector<8x384xf32>
    %106 = tpu.matmul %104, %105, %cst_40 {dimension_numbers = #tpu.dot_dimension_numbers<[1], [0], [0], [1], [0, 0, 1, 1], [], []>} : vector<8x128xbf16>, vector<128x384xbf16>, vector<8x384xf32> -> vector<8x384xf32>
    %c0_41 = arith.constant 0 : index
    %c0_42 = arith.constant 0 : index
    %107 = vector.load %arg7[%c0_41, %c0_42] : memref<1x384xf32, #tpu.memory_space<vmem>>, vector<1x384xf32>
    %108 = vector.broadcast %107 : vector<1x384xf32> to vector<8x384xf32>
    %109 = arith.addf %106, %108 : vector<8x384xf32>
    %110 = vector.extract_strided_slice %103 {offsets = [0, 0], sizes = [8, 128], strides = [1, 1]} : vector<8x384xf32> to vector<8x128xf32>
    %111 = vector.extract_strided_slice %103 {offsets = [0, 128], sizes = [8, 128], strides = [1, 1]} : vector<8x384xf32> to vector<8x128xf32>
    %112 = vector.extract_strided_slice %103 {offsets = [0, 256], sizes = [8, 128], strides = [1, 1]} : vector<8x384xf32> to vector<8x128xf32>
    %113 = vector.extract_strided_slice %109 {offsets = [0, 0], sizes = [8, 128], strides = [1, 1]} : vector<8x384xf32> to vector<8x128xf32>
    %114 = vector.extract_strided_slice %109 {offsets = [0, 128], sizes = [8, 128], strides = [1, 1]} : vector<8x384xf32> to vector<8x128xf32>
    %115 = vector.extract_strided_slice %109 {offsets = [0, 256], sizes = [8, 128], strides = [1, 1]} : vector<8x384xf32> to vector<8x128xf32>
    %116 = arith.addf %110, %113 : vector<8x128xf32>
    %117 = arith.negf %116 : vector<8x128xf32>
    %118 = math.exp %117 : vector<8x128xf32>
    %cst_43 = arith.constant 1.000000e+00 : f32
    %119 = vector.broadcast %cst_43 : f32 to vector<8x128xf32>
    %120 = arith.addf %119, %118 : vector<8x128xf32>
    %121 = arith.divf %119, %120 : vector<8x128xf32>
    %122 = arith.addf %111, %114 : vector<8x128xf32>
    %123 = arith.negf %122 : vector<8x128xf32>
    %124 = math.exp %123 : vector<8x128xf32>
    %cst_44 = arith.constant 1.000000e+00 : f32
    %125 = vector.broadcast %cst_44 : f32 to vector<8x128xf32>
    %126 = arith.addf %125, %124 : vector<8x128xf32>
    %127 = arith.divf %125, %126 : vector<8x128xf32>
    %128 = arith.mulf %121, %115 : vector<8x128xf32>
    %129 = arith.addf %112, %128 : vector<8x128xf32>
    %130 = math.tanh %129 : vector<8x128xf32>
    %131 = arith.addi %12, %c2_i32 : i32
    %132 = vector.broadcast %131 : i32 to vector<8x1xi32>
    %133 = arith.cmpi slt, %132, %11 : vector<8x1xi32>
    %cst_45 = arith.constant 1.000000e+00 : f32
    %134 = vector.shape_cast %133 : vector<8x1xi1> to vector<8x1xi1>
    %135 = vector.broadcast %134 : vector<8x1xi1> to vector<8x128xi1>
    %136 = vector.broadcast %cst_45 : f32 to vector<8x128xf32>
    %137 = arith.select %135, %127, %136 : vector<8x128xi1>, vector<8x128xf32>
    %cst_46 = arith.constant 1.000000e+00 : f32
    %138 = vector.broadcast %cst_46 : f32 to vector<8x128xf32>
    %139 = arith.subf %138, %137 : vector<8x128xf32>
    %140 = arith.mulf %139, %130 : vector<8x128xf32>
    %141 = arith.mulf %137, %99 : vector<8x128xf32>
    %142 = arith.addf %140, %141 : vector<8x128xf32>
    %c3_i32 = arith.constant 3 : i32
    %c8_i32_47 = arith.constant 8 : i32
    %143 = arith.muli %c3_i32, %c8_i32_47 : i32
    %144 = tpu.assume_multiple %143, 8 : i32
    %145 = arith.index_cast %144 : i32 to index
    %c0_48 = arith.constant 0 : index
    %146 = vector.load %arg10[%145, %c0_48] : memref<64x384xf32, #tpu.memory_space<vmem>>, vector<8x384xf32>
    %147 = arith.truncf %142 : vector<8x128xf32> to vector<8x128xbf16>
    %c0_49 = arith.constant 0 : index
    %c0_50 = arith.constant 0 : index
    %148 = vector.load %arg5[%c0_49, %c0_50] : memref<128x384xbf16, #tpu.memory_space<vmem>>, vector<128x384xbf16>
    %cst_51 = arith.constant dense<0.000000e+00> : vector<8x384xf32>
    %149 = tpu.matmul %147, %148, %cst_51 {dimension_numbers = #tpu.dot_dimension_numbers<[1], [0], [0], [1], [0, 0, 1, 1], [], []>} : vector<8x128xbf16>, vector<128x384xbf16>, vector<8x384xf32> -> vector<8x384xf32>
    %c0_52 = arith.constant 0 : index
    %c0_53 = arith.constant 0 : index
    %150 = vector.load %arg7[%c0_52, %c0_53] : memref<1x384xf32, #tpu.memory_space<vmem>>, vector<1x384xf32>
    %151 = vector.broadcast %150 : vector<1x384xf32> to vector<8x384xf32>
    %152 = arith.addf %149, %151 : vector<8x384xf32>
    %153 = vector.extract_strided_slice %146 {offsets = [0, 0], sizes = [8, 128], strides = [1, 1]} : vector<8x384xf32> to vector<8x128xf32>
    %154 = vector.extract_strided_slice %146 {offsets = [0, 128], sizes = [8, 128], strides = [1, 1]} : vector<8x384xf32> to vector<8x128xf32>
    %155 = vector.extract_strided_slice %146 {offsets = [0, 256], sizes = [8, 128], strides = [1, 1]} : vector<8x384xf32> to vector<8x128xf32>
    %156 = vector.extract_strided_slice %152 {offsets = [0, 0], sizes = [8, 128], strides = [1, 1]} : vector<8x384xf32> to vector<8x128xf32>
    %157 = vector.extract_strided_slice %152 {offsets = [0, 128], sizes = [8, 128], strides = [1, 1]} : vector<8x384xf32> to vector<8x128xf32>
    %158 = vector.extract_strided_slice %152 {offsets = [0, 256], sizes = [8, 128], strides = [1, 1]} : vector<8x384xf32> to vector<8x128xf32>
    %159 = arith.addf %153, %156 : vector<8x128xf32>
    %160 = arith.negf %159 : vector<8x128xf32>
    %161 = math.exp %160 : vector<8x128xf32>
    %cst_54 = arith.constant 1.000000e+00 : f32
    %162 = vector.broadcast %cst_54 : f32 to vector<8x128xf32>
    %163 = arith.addf %162, %161 : vector<8x128xf32>
    %164 = arith.divf %162, %163 : vector<8x128xf32>
    %165 = arith.addf %154, %157 : vector<8x128xf32>
    %166 = arith.negf %165 : vector<8x128xf32>
    %167 = math.exp %166 : vector<8x128xf32>
    %cst_55 = arith.constant 1.000000e+00 : f32
    %168 = vector.broadcast %cst_55 : f32 to vector<8x128xf32>
    %169 = arith.addf %168, %167 : vector<8x128xf32>
    %170 = arith.divf %168, %169 : vector<8x128xf32>
    %171 = arith.mulf %164, %158 : vector<8x128xf32>
    %172 = arith.addf %155, %171 : vector<8x128xf32>
    %173 = math.tanh %172 : vector<8x128xf32>
    %174 = arith.addi %12, %c3_i32 : i32
    %175 = vector.broadcast %174 : i32 to vector<8x1xi32>
    %176 = arith.cmpi slt, %175, %11 : vector<8x1xi32>
    %cst_56 = arith.constant 1.000000e+00 : f32
    %177 = vector.shape_cast %176 : vector<8x1xi1> to vector<8x1xi1>
    %178 = vector.broadcast %177 : vector<8x1xi1> to vector<8x128xi1>
    %179 = vector.broadcast %cst_56 : f32 to vector<8x128xf32>
    %180 = arith.select %178, %170, %179 : vector<8x128xi1>, vector<8x128xf32>
    %cst_57 = arith.constant 1.000000e+00 : f32
    %181 = vector.broadcast %cst_57 : f32 to vector<8x128xf32>
    %182 = arith.subf %181, %180 : vector<8x128xf32>
    %183 = arith.mulf %182, %173 : vector<8x128xf32>
    %184 = arith.mulf %180, %142 : vector<8x128xf32>
    %185 = arith.addf %183, %184 : vector<8x128xf32>
    %c4_i32 = arith.constant 4 : i32
    %c8_i32_58 = arith.constant 8 : i32
    %186 = arith.muli %c4_i32, %c8_i32_58 : i32
    %187 = tpu.assume_multiple %186, 8 : i32
    %188 = arith.index_cast %187 : i32 to index
    %c0_59 = arith.constant 0 : index
    %189 = vector.load %arg10[%188, %c0_59] : memref<64x384xf32, #tpu.memory_space<vmem>>, vector<8x384xf32>
    %190 = arith.truncf %185 : vector<8x128xf32> to vector<8x128xbf16>
    %c0_60 = arith.constant 0 : index
    %c0_61 = arith.constant 0 : index
    %191 = vector.load %arg5[%c0_60, %c0_61] : memref<128x384xbf16, #tpu.memory_space<vmem>>, vector<128x384xbf16>
    %cst_62 = arith.constant dense<0.000000e+00> : vector<8x384xf32>
    %192 = tpu.matmul %190, %191, %cst_62 {dimension_numbers = #tpu.dot_dimension_numbers<[1], [0], [0], [1], [0, 0, 1, 1], [], []>} : vector<8x128xbf16>, vector<128x384xbf16>, vector<8x384xf32> -> vector<8x384xf32>
    %c0_63 = arith.constant 0 : index
    %c0_64 = arith.constant 0 : index
    %193 = vector.load %arg7[%c0_63, %c0_64] : memref<1x384xf32, #tpu.memory_space<vmem>>, vector<1x384xf32>
    %194 = vector.broadcast %193 : vector<1x384xf32> to vector<8x384xf32>
    %195 = arith.addf %192, %194 : vector<8x384xf32>
    %196 = vector.extract_strided_slice %189 {offsets = [0, 0], sizes = [8, 128], strides = [1, 1]} : vector<8x384xf32> to vector<8x128xf32>
    %197 = vector.extract_strided_slice %189 {offsets = [0, 128], sizes = [8, 128], strides = [1, 1]} : vector<8x384xf32> to vector<8x128xf32>
    %198 = vector.extract_strided_slice %189 {offsets = [0, 256], sizes = [8, 128], strides = [1, 1]} : vector<8x384xf32> to vector<8x128xf32>
    %199 = vector.extract_strided_slice %195 {offsets = [0, 0], sizes = [8, 128], strides = [1, 1]} : vector<8x384xf32> to vector<8x128xf32>
    %200 = vector.extract_strided_slice %195 {offsets = [0, 128], sizes = [8, 128], strides = [1, 1]} : vector<8x384xf32> to vector<8x128xf32>
    %201 = vector.extract_strided_slice %195 {offsets = [0, 256], sizes = [8, 128], strides = [1, 1]} : vector<8x384xf32> to vector<8x128xf32>
    %202 = arith.addf %196, %199 : vector<8x128xf32>
    %203 = arith.negf %202 : vector<8x128xf32>
    %204 = math.exp %203 : vector<8x128xf32>
    %cst_65 = arith.constant 1.000000e+00 : f32
    %205 = vector.broadcast %cst_65 : f32 to vector<8x128xf32>
    %206 = arith.addf %205, %204 : vector<8x128xf32>
    %207 = arith.divf %205, %206 : vector<8x128xf32>
    %208 = arith.addf %197, %200 : vector<8x128xf32>
    %209 = arith.negf %208 : vector<8x128xf32>
    %210 = math.exp %209 : vector<8x128xf32>
    %cst_66 = arith.constant 1.000000e+00 : f32
    %211 = vector.broadcast %cst_66 : f32 to vector<8x128xf32>
    %212 = arith.addf %211, %210 : vector<8x128xf32>
    %213 = arith.divf %211, %212 : vector<8x128xf32>
    %214 = arith.mulf %207, %201 : vector<8x128xf32>
    %215 = arith.addf %198, %214 : vector<8x128xf32>
    %216 = math.tanh %215 : vector<8x128xf32>
    %217 = arith.addi %12, %c4_i32 : i32
    %218 = vector.broadcast %217 : i32 to vector<8x1xi32>
    %219 = arith.cmpi slt, %218, %11 : vector<8x1xi32>
    %cst_67 = arith.constant 1.000000e+00 : f32
    %220 = vector.shape_cast %219 : vector<8x1xi1> to vector<8x1xi1>
    %221 = vector.broadcast %220 : vector<8x1xi1> to vector<8x128xi1>
    %222 = vector.broadcast %cst_67 : f32 to vector<8x128xf32>
    %223 = arith.select %221, %213, %222 : vector<8x128xi1>, vector<8x128xf32>
    %cst_68 = arith.constant 1.000000e+00 : f32
    %224 = vector.broadcast %cst_68 : f32 to vector<8x128xf32>
    %225 = arith.subf %224, %223 : vector<8x128xf32>
    %226 = arith.mulf %225, %216 : vector<8x128xf32>
    %227 = arith.mulf %223, %185 : vector<8x128xf32>
    %228 = arith.addf %226, %227 : vector<8x128xf32>
    %c5_i32 = arith.constant 5 : i32
    %c8_i32_69 = arith.constant 8 : i32
    %229 = arith.muli %c5_i32, %c8_i32_69 : i32
    %230 = tpu.assume_multiple %229, 8 : i32
    %231 = arith.index_cast %230 : i32 to index
    %c0_70 = arith.constant 0 : index
    %232 = vector.load %arg10[%231, %c0_70] : memref<64x384xf32, #tpu.memory_space<vmem>>, vector<8x384xf32>
    %233 = arith.truncf %228 : vector<8x128xf32> to vector<8x128xbf16>
    %c0_71 = arith.constant 0 : index
    %c0_72 = arith.constant 0 : index
    %234 = vector.load %arg5[%c0_71, %c0_72] : memref<128x384xbf16, #tpu.memory_space<vmem>>, vector<128x384xbf16>
    %cst_73 = arith.constant dense<0.000000e+00> : vector<8x384xf32>
    %235 = tpu.matmul %233, %234, %cst_73 {dimension_numbers = #tpu.dot_dimension_numbers<[1], [0], [0], [1], [0, 0, 1, 1], [], []>} : vector<8x128xbf16>, vector<128x384xbf16>, vector<8x384xf32> -> vector<8x384xf32>
    %c0_74 = arith.constant 0 : index
    %c0_75 = arith.constant 0 : index
    %236 = vector.load %arg7[%c0_74, %c0_75] : memref<1x384xf32, #tpu.memory_space<vmem>>, vector<1x384xf32>
    %237 = vector.broadcast %236 : vector<1x384xf32> to vector<8x384xf32>
    %238 = arith.addf %235, %237 : vector<8x384xf32>
    %239 = vector.extract_strided_slice %232 {offsets = [0, 0], sizes = [8, 128], strides = [1, 1]} : vector<8x384xf32> to vector<8x128xf32>
    %240 = vector.extract_strided_slice %232 {offsets = [0, 128], sizes = [8, 128], strides = [1, 1]} : vector<8x384xf32> to vector<8x128xf32>
    %241 = vector.extract_strided_slice %232 {offsets = [0, 256], sizes = [8, 128], strides = [1, 1]} : vector<8x384xf32> to vector<8x128xf32>
    %242 = vector.extract_strided_slice %238 {offsets = [0, 0], sizes = [8, 128], strides = [1, 1]} : vector<8x384xf32> to vector<8x128xf32>
    %243 = vector.extract_strided_slice %238 {offsets = [0, 128], sizes = [8, 128], strides = [1, 1]} : vector<8x384xf32> to vector<8x128xf32>
    %244 = vector.extract_strided_slice %238 {offsets = [0, 256], sizes = [8, 128], strides = [1, 1]} : vector<8x384xf32> to vector<8x128xf32>
    %245 = arith.addf %239, %242 : vector<8x128xf32>
    %246 = arith.negf %245 : vector<8x128xf32>
    %247 = math.exp %246 : vector<8x128xf32>
    %cst_76 = arith.constant 1.000000e+00 : f32
    %248 = vector.broadcast %cst_76 : f32 to vector<8x128xf32>
    %249 = arith.addf %248, %247 : vector<8x128xf32>
    %250 = arith.divf %248, %249 : vector<8x128xf32>
    %251 = arith.addf %240, %243 : vector<8x128xf32>
    %252 = arith.negf %251 : vector<8x128xf32>
    %253 = math.exp %252 : vector<8x128xf32>
    %cst_77 = arith.constant 1.000000e+00 : f32
    %254 = vector.broadcast %cst_77 : f32 to vector<8x128xf32>
    %255 = arith.addf %254, %253 : vector<8x128xf32>
    %256 = arith.divf %254, %255 : vector<8x128xf32>
    %257 = arith.mulf %250, %244 : vector<8x128xf32>
    %258 = arith.addf %241, %257 : vector<8x128xf32>
    %259 = math.tanh %258 : vector<8x128xf32>
    %260 = arith.addi %12, %c5_i32 : i32
    %261 = vector.broadcast %260 : i32 to vector<8x1xi32>
    %262 = arith.cmpi slt, %261, %11 : vector<8x1xi32>
    %cst_78 = arith.constant 1.000000e+00 : f32
    %263 = vector.shape_cast %262 : vector<8x1xi1> to vector<8x1xi1>
    %264 = vector.broadcast %263 : vector<8x1xi1> to vector<8x128xi1>
    %265 = vector.broadcast %cst_78 : f32 to vector<8x128xf32>
    %266 = arith.select %264, %256, %265 : vector<8x128xi1>, vector<8x128xf32>
    %cst_79 = arith.constant 1.000000e+00 : f32
    %267 = vector.broadcast %cst_79 : f32 to vector<8x128xf32>
    %268 = arith.subf %267, %266 : vector<8x128xf32>
    %269 = arith.mulf %268, %259 : vector<8x128xf32>
    %270 = arith.mulf %266, %228 : vector<8x128xf32>
    %271 = arith.addf %269, %270 : vector<8x128xf32>
    %c6_i32 = arith.constant 6 : i32
    %c8_i32_80 = arith.constant 8 : i32
    %272 = arith.muli %c6_i32, %c8_i32_80 : i32
    %273 = tpu.assume_multiple %272, 8 : i32
    %274 = arith.index_cast %273 : i32 to index
    %c0_81 = arith.constant 0 : index
    %275 = vector.load %arg10[%274, %c0_81] : memref<64x384xf32, #tpu.memory_space<vmem>>, vector<8x384xf32>
    %276 = arith.truncf %271 : vector<8x128xf32> to vector<8x128xbf16>
    %c0_82 = arith.constant 0 : index
    %c0_83 = arith.constant 0 : index
    %277 = vector.load %arg5[%c0_82, %c0_83] : memref<128x384xbf16, #tpu.memory_space<vmem>>, vector<128x384xbf16>
    %cst_84 = arith.constant dense<0.000000e+00> : vector<8x384xf32>
    %278 = tpu.matmul %276, %277, %cst_84 {dimension_numbers = #tpu.dot_dimension_numbers<[1], [0], [0], [1], [0, 0, 1, 1], [], []>} : vector<8x128xbf16>, vector<128x384xbf16>, vector<8x384xf32> -> vector<8x384xf32>
    %c0_85 = arith.constant 0 : index
    %c0_86 = arith.constant 0 : index
    %279 = vector.load %arg7[%c0_85, %c0_86] : memref<1x384xf32, #tpu.memory_space<vmem>>, vector<1x384xf32>
    %280 = vector.broadcast %279 : vector<1x384xf32> to vector<8x384xf32>
    %281 = arith.addf %278, %280 : vector<8x384xf32>
    %282 = vector.extract_strided_slice %275 {offsets = [0, 0], sizes = [8, 128], strides = [1, 1]} : vector<8x384xf32> to vector<8x128xf32>
    %283 = vector.extract_strided_slice %275 {offsets = [0, 128], sizes = [8, 128], strides = [1, 1]} : vector<8x384xf32> to vector<8x128xf32>
    %284 = vector.extract_strided_slice %275 {offsets = [0, 256], sizes = [8, 128], strides = [1, 1]} : vector<8x384xf32> to vector<8x128xf32>
    %285 = vector.extract_strided_slice %281 {offsets = [0, 0], sizes = [8, 128], strides = [1, 1]} : vector<8x384xf32> to vector<8x128xf32>
    %286 = vector.extract_strided_slice %281 {offsets = [0, 128], sizes = [8, 128], strides = [1, 1]} : vector<8x384xf32> to vector<8x128xf32>
    %287 = vector.extract_strided_slice %281 {offsets = [0, 256], sizes = [8, 128], strides = [1, 1]} : vector<8x384xf32> to vector<8x128xf32>
    %288 = arith.addf %282, %285 : vector<8x128xf32>
    %289 = arith.negf %288 : vector<8x128xf32>
    %290 = math.exp %289 : vector<8x128xf32>
    %cst_87 = arith.constant 1.000000e+00 : f32
    %291 = vector.broadcast %cst_87 : f32 to vector<8x128xf32>
    %292 = arith.addf %291, %290 : vector<8x128xf32>
    %293 = arith.divf %291, %292 : vector<8x128xf32>
    %294 = arith.addf %283, %286 : vector<8x128xf32>
    %295 = arith.negf %294 : vector<8x128xf32>
    %296 = math.exp %295 : vector<8x128xf32>
    %cst_88 = arith.constant 1.000000e+00 : f32
    %297 = vector.broadcast %cst_88 : f32 to vector<8x128xf32>
    %298 = arith.addf %297, %296 : vector<8x128xf32>
    %299 = arith.divf %297, %298 : vector<8x128xf32>
    %300 = arith.mulf %293, %287 : vector<8x128xf32>
    %301 = arith.addf %284, %300 : vector<8x128xf32>
    %302 = math.tanh %301 : vector<8x128xf32>
    %303 = arith.addi %12, %c6_i32 : i32
    %304 = vector.broadcast %303 : i32 to vector<8x1xi32>
    %305 = arith.cmpi slt, %304, %11 : vector<8x1xi32>
    %cst_89 = arith.constant 1.000000e+00 : f32
    %306 = vector.shape_cast %305 : vector<8x1xi1> to vector<8x1xi1>
    %307 = vector.broadcast %306 : vector<8x1xi1> to vector<8x128xi1>
    %308 = vector.broadcast %cst_89 : f32 to vector<8x128xf32>
    %309 = arith.select %307, %299, %308 : vector<8x128xi1>, vector<8x128xf32>
    %cst_90 = arith.constant 1.000000e+00 : f32
    %310 = vector.broadcast %cst_90 : f32 to vector<8x128xf32>
    %311 = arith.subf %310, %309 : vector<8x128xf32>
    %312 = arith.mulf %311, %302 : vector<8x128xf32>
    %313 = arith.mulf %309, %271 : vector<8x128xf32>
    %314 = arith.addf %312, %313 : vector<8x128xf32>
    %c7_i32 = arith.constant 7 : i32
    %c8_i32_91 = arith.constant 8 : i32
    %315 = arith.muli %c7_i32, %c8_i32_91 : i32
    %316 = tpu.assume_multiple %315, 8 : i32
    %317 = arith.index_cast %316 : i32 to index
    %c0_92 = arith.constant 0 : index
    %318 = vector.load %arg10[%317, %c0_92] : memref<64x384xf32, #tpu.memory_space<vmem>>, vector<8x384xf32>
    %319 = arith.truncf %314 : vector<8x128xf32> to vector<8x128xbf16>
    %c0_93 = arith.constant 0 : index
    %c0_94 = arith.constant 0 : index
    %320 = vector.load %arg5[%c0_93, %c0_94] : memref<128x384xbf16, #tpu.memory_space<vmem>>, vector<128x384xbf16>
    %cst_95 = arith.constant dense<0.000000e+00> : vector<8x384xf32>
    %321 = tpu.matmul %319, %320, %cst_95 {dimension_numbers = #tpu.dot_dimension_numbers<[1], [0], [0], [1], [0, 0, 1, 1], [], []>} : vector<8x128xbf16>, vector<128x384xbf16>, vector<8x384xf32> -> vector<8x384xf32>
    %c0_96 = arith.constant 0 : index
    %c0_97 = arith.constant 0 : index
    %322 = vector.load %arg7[%c0_96, %c0_97] : memref<1x384xf32, #tpu.memory_space<vmem>>, vector<1x384xf32>
    %323 = vector.broadcast %322 : vector<1x384xf32> to vector<8x384xf32>
    %324 = arith.addf %321, %323 : vector<8x384xf32>
    %325 = vector.extract_strided_slice %318 {offsets = [0, 0], sizes = [8, 128], strides = [1, 1]} : vector<8x384xf32> to vector<8x128xf32>
    %326 = vector.extract_strided_slice %318 {offsets = [0, 128], sizes = [8, 128], strides = [1, 1]} : vector<8x384xf32> to vector<8x128xf32>
    %327 = vector.extract_strided_slice %318 {offsets = [0, 256], sizes = [8, 128], strides = [1, 1]} : vector<8x384xf32> to vector<8x128xf32>
    %328 = vector.extract_strided_slice %324 {offsets = [0, 0], sizes = [8, 128], strides = [1, 1]} : vector<8x384xf32> to vector<8x128xf32>
    %329 = vector.extract_strided_slice %324 {offsets = [0, 128], sizes = [8, 128], strides = [1, 1]} : vector<8x384xf32> to vector<8x128xf32>
    %330 = vector.extract_strided_slice %324 {offsets = [0, 256], sizes = [8, 128], strides = [1, 1]} : vector<8x384xf32> to vector<8x128xf32>
    %331 = arith.addf %325, %328 : vector<8x128xf32>
    %332 = arith.negf %331 : vector<8x128xf32>
    %333 = math.exp %332 : vector<8x128xf32>
    %cst_98 = arith.constant 1.000000e+00 : f32
    %334 = vector.broadcast %cst_98 : f32 to vector<8x128xf32>
    %335 = arith.addf %334, %333 : vector<8x128xf32>
    %336 = arith.divf %334, %335 : vector<8x128xf32>
    %337 = arith.addf %326, %329 : vector<8x128xf32>
    %338 = arith.negf %337 : vector<8x128xf32>
    %339 = math.exp %338 : vector<8x128xf32>
    %cst_99 = arith.constant 1.000000e+00 : f32
    %340 = vector.broadcast %cst_99 : f32 to vector<8x128xf32>
    %341 = arith.addf %340, %339 : vector<8x128xf32>
    %342 = arith.divf %340, %341 : vector<8x128xf32>
    %343 = arith.mulf %336, %330 : vector<8x128xf32>
    %344 = arith.addf %327, %343 : vector<8x128xf32>
    %345 = math.tanh %344 : vector<8x128xf32>
    %346 = arith.addi %12, %c7_i32 : i32
    %347 = vector.broadcast %346 : i32 to vector<8x1xi32>
    %348 = arith.cmpi slt, %347, %11 : vector<8x1xi32>
    %cst_100 = arith.constant 1.000000e+00 : f32
    %349 = vector.shape_cast %348 : vector<8x1xi1> to vector<8x1xi1>
    %350 = vector.broadcast %349 : vector<8x1xi1> to vector<8x128xi1>
    %351 = vector.broadcast %cst_100 : f32 to vector<8x128xf32>
    %352 = arith.select %350, %342, %351 : vector<8x128xi1>, vector<8x128xf32>
    %cst_101 = arith.constant 1.000000e+00 : f32
    %353 = vector.broadcast %cst_101 : f32 to vector<8x128xf32>
    %354 = arith.subf %353, %352 : vector<8x128xf32>
    %355 = arith.mulf %354, %345 : vector<8x128xf32>
    %356 = arith.mulf %352, %314 : vector<8x128xf32>
    %357 = arith.addf %355, %356 : vector<8x128xf32>
    %c8_i32_102 = arith.constant 8 : i32
    %c0_103 = arith.constant 0 : index
    %c0_104 = arith.constant 0 : index
    %358 = vector.load %arg9[%c0_103, %c0_104] : memref<8x128xf32, #tpu.memory_space<vmem>>, vector<8x128xf32>
    tpu.vector_store %arg9[%c0_103, %c0_104], %357 {strides = array<i32>} : memref<8x128xf32, #tpu.memory_space<vmem>>, vector<8x128xf32>,
    %c1_i32_105 = arith.constant 1 : i32
    %359 = arith.cmpi eq, %arg1, %c1_i32_105 : i32
    %360 = arith.extui %359 : i1 to i32
    %c0_i32_106 = arith.constant 0 : i32
    %361 = arith.cmpi ne, %360, %c0_i32_106 : i32
    scf.if %361 {
      %c0_107 = arith.constant 0 : index
      %c0_108 = arith.constant 0 : index
      %362 = vector.load %arg9[%c0_107, %c0_108] : memref<8x128xf32, #tpu.memory_space<vmem>>, vector<8x128xf32>
      %c0_109 = arith.constant 0 : index
      %c0_110 = arith.constant 0 : index
      %363 = vector.load %arg8[%c0_109, %c0_110] : memref<8x128xf32, #tpu.memory_space<vmem>>, vector<8x128xf32>
      tpu.vector_store %arg8[%c0_109, %c0_110], %362 {strides = array<i32>} : memref<8x128xf32, #tpu.memory_space<vmem>>, vector<8x128xf32>,
    } else {
    }
    return
  }
  func.func @transform_0(%arg0: i32, %arg1: i32) -> (i32, i32, i32) {
    %c0_i32 = arith.constant 0 : i32
    %c0_i32_0 = arith.constant 0 : i32
    return %arg1, %arg0, %c0_i32 : i32, i32, i32
  }
  func.func @transform_1(%arg0: i32, %arg1: i32) -> (i32, i32) {
    %c0_i32 = arith.constant 0 : i32
    %c0_i32_0 = arith.constant 0 : i32
    return %arg0, %c0_i32 : i32, i32
  }
  func.func @transform_2(%arg0: i32, %arg1: i32) -> (i32, i32) {
    %c0_i32 = arith.constant 0 : i32
    %c0_i32_0 = arith.constant 0 : i32
    %c0_i32_1 = arith.constant 0 : i32
    return %c0_i32, %c0_i32_0 : i32, i32
  }
  func.func @transform_3(%arg0: i32, %arg1: i32) -> (i32, i32) {
    %c0_i32 = arith.constant 0 : i32
    %c0_i32_0 = arith.constant 0 : i32
    %c0_i32_1 = arith.constant 0 : i32
    return %c0_i32, %c0_i32_0 : i32, i32
  }
  func.func @transform_4(%arg0: i32, %arg1: i32) -> (i32, i32) {
    %c0_i32 = arith.constant 0 : i32
    %c0_i32_0 = arith.constant 0 : i32
    %c0_i32_1 = arith.constant 0 : i32
    return %c0_i32, %c0_i32_0 : i32, i32
  }
  func.func @transform_5(%arg0: i32, %arg1: i32) -> (i32, i32) {
    %c0_i32 = arith.constant 0 : i32
    %c0_i32_0 = arith.constant 0 : i32
    %c0_i32_1 = arith.constant 0 : i32
    return %c0_i32, %c0_i32_0 : i32, i32
  }
  func.func @transform_6(%arg0: i32, %arg1: i32) -> (i32, i32) {
    %c0_i32 = arith.constant 0 : i32
    %c0_i32_0 = arith.constant 0 : i32
    return %arg0, %c0_i32 : i32, i32
  }
}

</mosaic_0001>

<llo_original>
// kernel: tpu_custom_call.1
$region0: #{tpu_custom_call.1}
  #allocation0 [shape = 'u32[]', space=smem, size = 0x4, offset = 0x4, fixed_abs, tag = 'smem constant byte address 0x4 - core index']
  #allocation1 [shape = 'u32[144,128]{1,0:T(1,128)}', space=vmem, size = 0x12000, scoped, tag = 'internal scratch']
  #allocation2 [shape = 'f32[8,128]{1,0:T(8,128)}', space=vmem, size = 0x1000, scoped, tag = 'scratch operand']
  #allocation3 [shape = 'f32[64,384]{1,0:T(8,128)}', space=vmem, size = 0x18000, scoped, tag = 'scratch operand']
  %s0 = inlined_call_operand.hbm [shape: bf16[16,8,64], index: 0, kind: input, shape index: {}]
  %s1 = inlined_call_operand.vmem [shape: s32[8,1], index: 1, kind: input, shape index: {}]
  %s2 = inlined_call_operand.hbm [shape: bf16[64,384], index: 2, kind: input, shape index: {}]
  %s3 = inlined_call_operand.hbm [shape: bf16[128,384], index: 3, kind: input, shape index: {}]
  %s4 = inlined_call_operand.vmem [shape: f32[1,384], index: 4, kind: input, shape index: {}]
  %s5 = inlined_call_operand.vmem [shape: f32[1,384], index: 5, kind: input, shape index: {}]
  %s6 = inlined_call_operand.hbm [shape: f32[8,128], index: 6, kind: output, shape index: {}]
  %s7 = sld [smem:[#allocation0]]
  $region77: #{tpu_custom_call.1} parent=0
    _
  %s9 = ssub.s32 1, %s7
  %s10 = scalar_select 0, %s9, %s7
  $region1: #{tpu_custom_call.1} parent=0
    #allocation4 [shape = 'u8[32768]{0}', space=vmem, size = 0x8000, scoped, tag = 'input window, operand 0']
    #allocation5 [shape = 's32[2]{0}', space=sflag, size = 0x8, scoped, tag = 'scoped memory for tpu_custom_call.1']
    #allocation6 [shape = 's32[2]{0}', space=sflag, size = 0x8, scoped, tag = 'scoped memory for tpu_custom_call.1']
    #allocation7 [shape = 'u8[49152]{0}', space=vmem, size = 0xc000, scoped, tag = 'input window, operand 2, single buffered']
    #allocation8 [shape = 's32[1]{0}', space=sflag, size = 0x4, scoped, tag = 'scoped memory for tpu_custom_call.1']
    #allocation9 [shape = 'u8[98304]{0}', space=vmem, size = 0x18000, scoped, tag = 'input window, operand 3, single buffered']
    #allocation10 [shape = 'u8[4096]{0}', space=vmem, size = 0x1000, scoped, tag = 'output window, operand 0, single buffered']
    %11 = vsyncpa [#allocation5], 0
    %s12 = scalar_lea.sflag [#allocation5], 1
    %13 = vsyncpa %s12, 0
    %14 = vsyncpa [#allocation8], 0
    %15 = vsyncpa [#allocation6], 0
    loop: start=0, step=1, limit=4
    $region2: #{tpu_custom_call.1} parent=1 // loop_pre_header
      _
    $region3: #{tpu_custom_call.1} parent=1 // loop_header
      %s17 = sphi 0, %s21
      %p18 = scmp.ge.s32.totalorder %s17, 4
      %s24 = sphi 0, %s36
      %s25 = sphi 0, %s32
      %s26 = sphi 0, %s24
      %s27 = sphi 0, %s25
      %s28 = sphi 0, %s26
      %s29 = sphi 0, %s27
      %s41 = sphi 0, %s43
      %s44 = sphi 0, %s41
      %s45 = sphi 0, %s44
      %s61 = sphi 0, %s45
      %s67 = sphi 0, %s69
      %s70 = sphi 0, %s67
      %s71 = sphi 0, %s70
      %s87 = sphi 0, %s71
      %s91 = sphi 0, %s91
      %s93 = sphi 0, %s91
      %s94 = sphi 0, %s93
      %s108 = sphi 0, %s94
      %s112 = sphi 0, %s112
      %s114 = sphi 0, %s112
      %s115 = sphi 0, %s114
      %s129 = sphi 0, %s115
      %s133 = sphi 0, %s133
      %s135 = sphi 0, %s133
      %s136 = sphi 0, %s135
      %s150 = sphi 0, %s136
      %s154 = sphi 0, %s154
      %s156 = sphi 0, %s154
      %s157 = sphi 0, %s156
      %s171 = sphi 0, %s157
      %s177 = sphi 0, %s179
      %s180 = sphi 0, %s177
      %s181 = sphi 0, %s180
      %s197 = sphi 0, %s181
    $region4: #{tpu_custom_call.1} parent=1 // loop_header_branch
      %20 = sbr.rel (%p18) target = $region8
    $region5: #{tpu_custom_call.1} parent=1 // loop_body
      %s22 = ssub.s32 %s17, 1
      %s23 = ssub.s32 %s17, 2
      %s30 = sadd.s32 1, %s25
      %p31 = scmp.ge.s32.totalorder %s30, 2
      %s32 = scalar_select %p31, 0, %s30
      %s33 = sadd.s32 1, %s24
      %s34 = scalar_select %p31, %s33, %s24
      %p35 = scmp.ge.s32.totalorder %s34, 1
      %s36 = scalar_select %p35, 0, %s34
      %s37 = ssub.s32 %s25, %s32
      %s38 = ssub.s32 %s24, %s36
      %s39 = sor.u32 %s37, %s38
      %p40 = scmp.eq.s32.totalorder %s39, 0
      %s42 = sadd.s32 %s41, 1
      %s43 = scalar_select %p40, %s41, %s42
      %p46 = pneg %p40
      %p47 = scmp.eq.s32.totalorder %s17, 1
      %p48 = por %p46, %p47
      %p49 = scmp.ne.s32.totalorder %s41, %s44
      %p50 = scmp.eq.s32.totalorder %s17, 0
      %p51 = por %p49, %p50
      %p52 = scmp.ne.s32.totalorder %s41, %s44
      %p53 = scmp.eq.s32.totalorder %s22, 1
      %p54 = por %p52, %p53
      %p55 = scmp.ne.s32.totalorder %s44, %s45
      %p56 = scmp.eq.s32.totalorder %s22, 0
      %p57 = por %p55, %p56
      %p58 = scmp.ne.s32.totalorder %s44, %s45
      %p59 = scmp.eq.s32.totalorder %s23, 1
      %p60 = por %p58, %p59
      %p62 = scmp.ne.s32.totalorder %s45, %s61
      %p63 = scmp.eq.s32.totalorder %s23, 0
      %p64 = por %p62, %p63
      %s65 = ssub.s32 %s24, %s36
      %p66 = scmp.eq.s32.totalorder %s65, 0
      %s68 = sadd.s32 %s67, 1
      %s69 = scalar_select %p66, %s67, %s68
      %p72 = pneg %p66
      %p73 = scmp.eq.s32.totalorder %s17, 1
      %p74 = por %p72, %p73
      %p75 = scmp.ne.s32.totalorder %s67, %s70
      %p76 = scmp.eq.s32.totalorder %s17, 0
      %p77 = por %p75, %p76
      %p78 = scmp.ne.s32.totalorder %s67, %s70
      %p79 = scmp.eq.s32.totalorder %s22, 1
      %p80 = por %p78, %p79
      %p81 = scmp.ne.s32.totalorder %s70, %s71
      %p82 = scmp.eq.s32.totalorder %s22, 0
      %p83 = por %p81, %p82
      %p84 = scmp.ne.s32.totalorder %s70, %s71
      %p85 = scmp.eq.s32.totalorder %s23, 1
      %p86 = por %p84, %p85
      %p88 = scmp.ne.s32.totalorder %s71, %s87
      %p89 = scmp.eq.s32.totalorder %s23, 0
      %p90 = por %p88, %p89
      %s92 = sadd.s32 %s91, 1
      %p95 = scmp.eq.s32.totalorder %s17, 1
      %p96 = scmp.ne.s32.totalorder %s91, %s93
      %p97 = scmp.eq.s32.totalorder %s17, 0
      %p98 = por %p96, %p97
      %p99 = scmp.ne.s32.totalorder %s91, %s93
      %p100 = scmp.eq.s32.totalorder %s22, 1
      %p101 = por %p99, %p100
      %p102 = scmp.ne.s32.totalorder %s93, %s94
      %p103 = scmp.eq.s32.totalorder %s22, 0
      %p104 = por %p102, %p103
      %p105 = scmp.ne.s32.totalorder %s93, %s94
      %p106 = scmp.eq.s32.totalorder %s23, 1
      %p107 = por %p105, %p106
      %p109 = scmp.ne.s32.totalorder %s94, %s108
      %p110 = scmp.eq.s32.totalorder %s23, 0
      %p111 = por %p109, %p110
      %s113 = sadd.s32 %s112, 1
      %p116 = scmp.eq.s32.totalorder %s17, 1
      %p117 = scmp.ne.s32.totalorder %s112, %s114
      %p118 = scmp.eq.s32.totalorder %s17, 0
      %p119 = por %p117, %p118
      %p120 = scmp.ne.s32.totalorder %s112, %s114
      %p121 = scmp.eq.s32.totalorder %s22, 1
      %p122 = por %p120, %p121
      %p123 = scmp.ne.s32.totalorder %s114, %s115
      %p124 = scmp.eq.s32.totalorder %s22, 0
      %p125 = por %p123, %p124
      %p126 = scmp.ne.s32.totalorder %s114, %s115
      %p127 = scmp.eq.s32.totalorder %s23, 1
      %p128 = por %p126, %p127
      %p130 = scmp.ne.s32.totalorder %s115, %s129
      %p131 = scmp.eq.s32.totalorder %s23, 0
      %p132 = por %p130, %p131
      %s134 = sadd.s32 %s133, 1
      %p137 = scmp.eq.s32.totalorder %s17, 1
      %p138 = scmp.ne.s32.totalorder %s133, %s135
      %p139 = scmp.eq.s32.totalorder %s17, 0
      %p140 = por %p138, %p139
      %p141 = scmp.ne.s32.totalorder %s133, %s135
      %p142 = scmp.eq.s32.totalorder %s22, 1
      %p143 = por %p141, %p142
      %p144 = scmp.ne.s32.totalorder %s135, %s136
      %p145 = scmp.eq.s32.totalorder %s22, 0
      %p146 = por %p144, %p145
      %p147 = scmp.ne.s32.totalorder %s135, %s136
      %p148 = scmp.eq.s32.totalorder %s23, 1
      %p149 = por %p147, %p148
      %p151 = scmp.ne.s32.totalorder %s136, %s150
      %p152 = scmp.eq.s32.totalorder %s23, 0
      %p153 = por %p151, %p152
      %s155 = sadd.s32 %s154, 1
      %p158 = scmp.eq.s32.totalorder %s17, 1
      %p159 = scmp.ne.s32.totalorder %s154, %s156
      %p160 = scmp.eq.s32.totalorder %s17, 0
      %p161 = por %p159, %p160
      %p162 = scmp.ne.s32.totalorder %s154, %s156
      %p163 = scmp.eq.s32.totalorder %s22, 1
      %p164 = por %p162, %p163
      %p165 = scmp.ne.s32.totalorder %s156, %s157
      %p166 = scmp.eq.s32.totalorder %s22, 0
      %p167 = por %p165, %p166
      %p168 = scmp.ne.s32.totalorder %s156, %s157
      %p169 = scmp.eq.s32.totalorder %s23, 1
      %p170 = por %p168, %p169
      %p172 = scmp.ne.s32.totalorder %s157, %s171
      %p173 = scmp.eq.s32.totalorder %s23, 0
      %p174 = por %p172, %p173
      %s175 = ssub.s32 %s24, %s36
      %p176 = scmp.eq.s32.totalorder %s175, 0
      %s178 = sadd.s32 %s177, 1
      %s179 = scalar_select %p176, %s177, %s178
      %p182 = pneg %p176
      %p183 = scmp.eq.s32.totalorder %s17, 1
      %p184 = por %p182, %p183
      %p185 = scmp.ne.s32.totalorder %s177, %s180
      %p186 = scmp.eq.s32.totalorder %s17, 0
      %p187 = por %p185, %p186
      %p188 = scmp.ne.s32.totalorder %s177, %s180
      %p189 = scmp.eq.s32.totalorder %s22, 1
      %p190 = por %p188, %p189
      %p191 = scmp.ne.s32.totalorder %s180, %s181
      %p192 = scmp.eq.s32.totalorder %s22, 0
      %p193 = por %p191, %p192
      %p194 = scmp.ne.s32.totalorder %s180, %s181
      %p195 = scmp.eq.s32.totalorder %s23, 1
      %p196 = por %p194, %p195
      %p198 = scmp.ne.s32.totalorder %s181, %s197
      %p199 = scmp.eq.s32.totalorder %s23, 0
      %p200 = por %p198, %p199
      %p201 = scmp.le.s32.totalorder 1, %s17
      %p202 = scmp.lt.s32.totalorder %s17, 3
      %p203 = pnand %p201, %p202
      %p204 = pneg %p203
      // Predicated region
      $region9: #{tpu_custom_call.1} parent=5 // pred_check
        _
      $region10: #{tpu_custom_call.1} parent=5 // pred_check_branch
        %206 = sbr.rel (%p203) target = $region12
      $region11: #{tpu_custom_call.1} parent=5 // pred_region
        %s207 = ssub.s32 %s17, 1
        // Predicated region
        $region13: #{tpu_custom_call.1} parent=11 // pred_check
          %p208 = pneg %p83
        $region14: #{tpu_custom_call.1} parent=11 // pred_check_branch
          %210 = sbr.rel (%p208) target = $region16
        $region15: #{tpu_custom_call.1} parent=11 // pred_region
          %p211 = scmp.lt.s32.totalorder %s26, 0
          %s212 = scalar_select %p211, %s26, 0
          %s213 = smul.addr %s212, 8
          %s214 = scalar_lea.vmem %s1, %s213
        $region16: #{tpu_custom_call.1} parent=11 // pred_fallthru
          _
        // Predicated region
        $region17: #{tpu_custom_call.1} parent=11 // pred_check
          %p215 = pneg %p104
        $region18: #{tpu_custom_call.1} parent=11 // pred_check_branch
          %217 = sbr.rel (%p215) target = $region20
        $region19: #{tpu_custom_call.1} parent=11 // pred_region
          %s219 = ssub.s32 1536, 1536
          %220 = vsyncadd [#allocation8], %s219
          %s221 = sshll.u32 [#allocation7], 4
          %s222 = int_to_ptr.vmem [resolvable:$true] %s221
          %227 = dma.hbm_to_vmem [thread:$0]  %s2, 1536, %s222, [#allocation8], 192, 192, 12
        $region20: #{tpu_custom_call.1} parent=11 // pred_fallthru
          _
        // Predicated region
        $region21: #{tpu_custom_call.1} parent=11 // pred_check
          %p228 = pneg %p125
        $region22: #{tpu_custom_call.1} parent=11 // pred_check_branch
          %230 = sbr.rel (%p228) target = $region24
        $region23: #{tpu_custom_call.1} parent=11 // pred_region
          %s232 = ssub.s32 3072, 3072
          %233 = vsyncadd [#allocation8], %s232
          %s234 = sshll.u32 [#allocation9], 4
          %s235 = int_to_ptr.vmem [resolvable:$true] %s234
          %240 = dma.hbm_to_vmem [thread:$0]  %s3, 3072, %s235, [#allocation8], 192, 192, 12
        $region24: #{tpu_custom_call.1} parent=11 // pred_fallthru
          _
        // Predicated region
        $region25: #{tpu_custom_call.1} parent=11 // pred_check
          %p241 = pneg %p146
        $region26: #{tpu_custom_call.1} parent=11 // pred_check_branch
          %243 = sbr.rel (%p241) target = $region28
        $region27: #{tpu_custom_call.1} parent=11 // pred_region
          _
        $region28: #{tpu_custom_call.1} parent=11 // pred_fallthru
          _
        // Predicated region
        $region29: #{tpu_custom_call.1} parent=11 // pred_check
          %p244 = pneg %p167
        $region30: #{tpu_custom_call.1} parent=11 // pred_check_branch
          %246 = sbr.rel (%p244) target = $region32
        $region31: #{tpu_custom_call.1} parent=11 // pred_region
          _
        $region32: #{tpu_custom_call.1} parent=11 // pred_fallthru
          _
      $region12: #{tpu_custom_call.1} parent=5 // pred_fallthru
        _
      %p247 = scmp.lt.s32.totalorder %s17, 2
      // Predicated region
      $region33: #{tpu_custom_call.1} parent=5 // pred_check
        %p248 = pneg %p247
      $region34: #{tpu_custom_call.1} parent=5 // pred_check_branch
        %250 = sbr.rel (%p248) target = $region36
      $region35: #{tpu_custom_call.1} parent=5 // pred_region
        // Predicated region
        $region37: #{tpu_custom_call.1} parent=35 // pred_check
          %p251 = pneg %p51
        $region38: #{tpu_custom_call.1} parent=35 // pred_check_branch
          %253 = sbr.rel (%p251) target = $region40
        $region39: #{tpu_custom_call.1} parent=35 // pred_region
          %s254 = sand.u32 %s41, 1
          %s255 = scalar_lea.sflag [#allocation5], %s254
          %s256 = sand.u32 %s41, 1
          %s257 = smul.addr %s256, 32
          %s258 = scalar_lea.vmem [#allocation4], %s257
          %s259 = smul.u32 8, %s25
          %s261 = ssub.s32 512, 512
          %262 = vsyncadd %s255, %s261
          %s263 = sadd.s32 %s24, %s259
          %s264 = smul.addr %s263, 64
          %s265 = scalar_lea.hbm %s0, %s264
          %s266 = sshll.u32 %s258, 4
          %s267 = int_to_ptr.vmem [resolvable:$true] %s266
          %272 = dma.hbm_to_vmem [thread:$0]  %s265, 512, %s267, %s255, 64, 64, 4
        $region40: #{tpu_custom_call.1} parent=35 // pred_fallthru
          _
      $region36: #{tpu_custom_call.1} parent=5 // pred_fallthru
        _
      %p273 = scmp.le.s32.totalorder 1, %s17
      %p274 = scmp.lt.s32.totalorder %s17, 3
      %p275 = pnand %p273, %p274
      %p276 = pneg %p275
      // Predicated region
      $region41: #{tpu_custom_call.1} parent=5 // pred_check
        _
      $region42: #{tpu_custom_call.1} parent=5 // pred_check_branch
        %278 = sbr.rel (%p275) target = $region44
      $region43: #{tpu_custom_call.1} parent=5 // pred_region
        %s279 = ssub.s32 %s17, 1
        %s280 = sand.u32 %s44, 1
        %s281 = scalar_lea.sflag [#allocation5], %s280
        %s282 = sand.u32 %s44, 1
        %s283 = smul.addr %s282, 32
        %s284 = scalar_lea.vmem [#allocation4], %s283
        // Predicated region
        $region45: #{tpu_custom_call.1} parent=43 // pred_check
          %p285 = pneg %p57
        $region46: #{tpu_custom_call.1} parent=43 // pred_check_branch
          %287 = sbr.rel (%p285) target = $region48
        $region47: #{tpu_custom_call.1} parent=43 // pred_region
          %288 = dma.done %s281, 512
        $region48: #{tpu_custom_call.1} parent=43 // pred_fallthru
          _
        // Predicated region
        $region49: #{tpu_custom_call.1} parent=43 // pred_check
          %p289 = pneg %p104
        $region50: #{tpu_custom_call.1} parent=43 // pred_check_branch
          %291 = sbr.rel (%p289) target = $region52
        $region51: #{tpu_custom_call.1} parent=43 // pred_region
          %292 = dma.done [#allocation8], 1536
        $region52: #{tpu_custom_call.1} parent=43 // pred_fallthru
          _
        // Predicated region
        $region53: #{tpu_custom_call.1} parent=43 // pred_check
          %p293 = pneg %p125
        $region54: #{tpu_custom_call.1} parent=43 // pred_check_branch
          %295 = sbr.rel (%p293) target = $region56
        $region55: #{tpu_custom_call.1} parent=43 // pred_region
          %296 = dma.done [#allocation8], 3072
        $region56: #{tpu_custom_call.1} parent=43 // pred_fallthru
          _
        %s297 = sand.u32 %s44, 1
        %s298 = scalar_lea.sflag [#allocation5], %s297
        %s299 = sand.u32 %s44, 1
        %s300 = smul.addr %s299, 32
        %s301 = scalar_lea.vmem [#allocation4], %s300
        %p302 = pneg %p57
        %p303 = pneg %p54
        %p304 = scmp.lt.s32.totalorder %s26, 0
        %s305 = scalar_select %p304, %s26, 0
        %s306 = smul.addr %s305, 8
        %s307 = scalar_lea.vmem %s1, %s306
        %p308 = pneg %p83
        %p309 = pneg %p80
        %p310 = pneg %p104
        %p311 = pneg %p101
        %p312 = pneg %p125
        %p313 = pneg %p122
        %p314 = pneg %p146
        %p315 = pneg %p143
        %p316 = pneg %p167
        %p317 = pneg %p164
        %p318 = pneg %p193
        %p319 = pneg %p190
        %s320 = smul.u32 8, %s27
        %p321 = scmp.lt.s32.totalorder %s26, 0
        %s322 = scalar_select %p321, %s26, 0
        %s323 = smul.addr %s322, 8
        %s324 = scalar_lea.vmem %s1, %s323
        %p326 = scmp.eq.s32.totalorder %s27, 0
        // Predicated region
        $region57: #{tpu_custom_call.1} parent=43 // pred_check
          %p327 = pneg %p326
        $region58: #{tpu_custom_call.1} parent=43 // pred_check_branch
          %329 = sbr.rel (%p327) target = $region60
        $region59: #{tpu_custom_call.1} parent=43 // pred_region
          %330 = vst [vmem:[#allocation2] sm:$0xff] 0.0
        $region60: #{tpu_custom_call.1} parent=43 // pred_fallthru
          _
        %v331 = vld [vmem:[%s284] sm:$0xf]
        %v332 = vld [vmem:[%s284 + $0x4] sm:$0xf]
        %v333 = vld [vmem:[%s284 + $0x8] sm:$0xf]
        %v334 = vld [vmem:[%s284 + $0xc] sm:$0xf]
        %v335 = vld [vmem:[%s284 + $0x10] sm:$0xf]
        %v336 = vld [vmem:[%s284 + $0x14] sm:$0xf]
        %v337 = vld [vmem:[%s284 + $0x18] sm:$0xf]
        %v338 = vld [vmem:[%s284 + $0x1c] sm:$0xf]
        %v339 = vld [vmem:[#allocation7] sm:$0xff]
        %v340 = vld [vmem:[#allocation7 + $0x8] sm:$0xf]
        %v341 = vld [vmem:[#allocation7 + $0xc] sm:$0xff]
        %v342 = vld [vmem:[#allocation7 + $0x14] sm:$0xf]
        %v343 = vld [vmem:[#allocation7 + $0x18] sm:$0xff]
        %v344 = vld [vmem:[#allocation7 + $0x20] sm:$0xf]
        %v345 = vld [vmem:[#allocation7 + $0x24] sm:$0xff]
        %v346 = vld [vmem:[#allocation7 + $0x2c] sm:$0xf]
        %v347 = vld [vmem:[#allocation7 + $0x30] sm:$0xff]
        %v348 = vld [vmem:[#allocation7 + $0x38] sm:$0xf]
        %v349 = vld [vmem:[#allocation7 + $0x3c] sm:$0xff]
        %v350 = vld [vmem:[#allocation7 + $0x44] sm:$0xf]
        %v351 = vld [vmem:[#allocation7 + $0x48] sm:$0xff]
        %v352 = vld [vmem:[#allocation7 + $0x50] sm:$0xf]
        %v353 = vld [vmem:[#allocation7 + $0x54] sm:$0xff]
        %v354 = vld [vmem:[#allocation7 + $0x5c] sm:$0xf]
        %v355 = vld [vmem:[%s4] sm:$0x7]
        %v357 = vlaneseq
        %v358 = vshrl.u32 %v357, 7
        %v359 = vsub.s32 0, %v358
        %v360 = vrot.slane %v355, %v359
        %v361 = vlaneseq
        %v362 = vshrl.u32 %v361, 7
        %v363 = vsub.s32 1, %v362
        %v364 = vrot.slane %v355, %v363
        %v365 = vlaneseq
        %v366 = vshrl.u32 %v365, 7
        %v367 = vsub.s32 2, %v366
        %v368 = vrot.slane %v355, %v367
        %v380 = vunpack.c.l.b16 %v331
        %v381 = vunpack.c.l.b16 %v332
        %v382 = vunpack.c.l.b16 %v333
        %v383 = vunpack.c.l.b16 %v334
        %v384 = vunpack.c.l.b16 %v335
        %v385 = vunpack.c.l.b16 %v336
        %v386 = vunpack.c.l.b16 %v337
        %v387 = vunpack.c.l.b16 %v338
        %v388 = vpack.c.b16 %v381, %v380
        %v389 = vpack.c.b16 %v383, %v382
        %v390 = vpack.c.b16 %v385, %v384
        %v391 = vpack.c.b16 %v387, %v386
        %v408 = vunpack.c.l.b16 %v339
        %v409 = vunpack.c.h.b16 %v339
        %v410 = vunpack.c.l.b16 %v340
        %v411 = vunpack.c.l.b16 %v341
        %v412 = vunpack.c.h.b16 %v341
        %v413 = vunpack.c.l.b16 %v342
        %v414 = vunpack.c.l.b16 %v343
        %v415 = vunpack.c.h.b16 %v343
        %v416 = vunpack.c.l.b16 %v344
        %v417 = vunpack.c.l.b16 %v345
        %v418 = vunpack.c.h.b16 %v345
        %v419 = vunpack.c.l.b16 %v346
        %v420 = vunpack.c.l.b16 %v347
        %v421 = vunpack.c.h.b16 %v347
        %v422 = vunpack.c.l.b16 %v348
        %v423 = vunpack.c.l.b16 %v349
        %v424 = vunpack.c.h.b16 %v349
        %v425 = vunpack.c.l.b16 %v350
        %v426 = vunpack.c.l.b16 %v351
        %v427 = vunpack.c.h.b16 %v351
        %v428 = vunpack.c.l.b16 %v352
        %v429 = vunpack.c.l.b16 %v353
        %v430 = vunpack.c.h.b16 %v353
        %v431 = vunpack.c.l.b16 %v354
        %v432 = vpack.c.b16 %v411, %v408
        %v433 = vpack.c.b16 %v412, %v409
        %v434 = vpack.c.b16 %v413, %v410
        %v435 = vpack.c.b16 %v417, %v414
        %v436 = vpack.c.b16 %v418, %v415
        %v437 = vpack.c.b16 %v419, %v416
        %v438 = vpack.c.b16 %v423, %v420
        %v439 = vpack.c.b16 %v424, %v421
        %v440 = vpack.c.b16 %v425, %v422
        %v441 = vpack.c.b16 %v429, %v426
        %v442 = vpack.c.b16 %v430, %v427
        %v443 = vpack.c.b16 %v431, %v428
        %vm456 = vcmask 523264
        %v458 = vsel %vm456, %v388, 0
        %v461 = vsel %vm456, %v389, 0
        %v464 = vsel %vm456, %v390, 0
        %v467 = vsel %vm456, %v391, 0
        %469 = vmatprep.subr.bf16.mxu0 %v433
        %470 = vmatpush1.bf16.msra.mxu0 %v432
        %471 = vmatprep.subr.bf16.mxu0 %v436
        %472 = vmatpush1.bf16.msra.mxu0 %v435
        %473 = vmatprep.subr.bf16.mxu0 %v439
        %474 = vmatpush1.bf16.msra.mxu0 %v438
        %475 = vmatprep.subr.bf16.mxu0 %v442
        %476 = vmatpush1.bf16.msra.mxu0 %v441
        %477 = vmatprep.subr.bf16.mxu0 0
        %478 = vmatpush1.bf16.msra.mxu0 0
        %479 = vmatprep.subr.bf16.mxu0 0
        %480 = vmatpush1.bf16.msra.mxu0 0
        %481 = vmatprep.subr.bf16.mxu0 0
        %482 = vmatpush1.bf16.msra.mxu0 0
        %483 = vmatprep.subr.bf16.mxu0 0
        %484 = vmatpush1.bf16.msra.mxu0 0
        %485 = vmatprep.subr.bf16.mxu0 0
        %486 = vmatpush1.bf16.msra.mxu0 0
        %487 = vmatprep.subr.bf16.mxu0 0
        %488 = vmatpush1.bf16.msra.mxu0 0
        %489 = vmatprep.subr.bf16.mxu0 0
        %490 = vmatpush1.bf16.msra.mxu0 0
        %491 = vmatprep.subr.bf16.mxu0 0
        %492 = vmatpush1.bf16.msra.mxu0 0
        %493 = vmatprep.subr.bf16.mxu0 0
        %494 = vmatpush1.bf16.msra.mxu0 0
        %495 = vmatprep.subr.bf16.mxu0 0
        %496 = vmatpush1.bf16.msra.mxu0 0
        %497 = vmatprep.subr.bf16.mxu0 0
        %498 = vmatpush1.bf16.msra.mxu0 0
        %499 = vmatprep.subr.bf16.mxu0 0
        %500 = vmatpush1.bf16.msra.mxu0 0
        %501 = vmatprep.mubr.bf16.mxu0 0
        %502 = vmatmul.mubr.bf16.gmra.mrb[0].mxu0 %v458
        %v503 = vpop.f32.mrb[0].mxu0
        %v504 = vadd.f32 %v360, %v503
        %v505 = vpop.f32.mrb[0].mxu0
        %v506 = vadd.f32 %v364, %v505
        %v507 = vpop.f32.mrb[0].mxu0
        %v508 = vadd.f32 %v360, %v507
        %v509 = vpop.f32.mrb[0].mxu0
        %v510 = vadd.f32 %v364, %v509
        %511 = vmatprep.mubr.bf16.mxu0 0
        %512 = vmatmul.mubr.bf16.gmra.mrb[0].mxu0 %v461
        %v513 = vpop.f32.mrb[0].mxu0
        %v514 = vadd.f32 %v360, %v513
        %v515 = vpop.f32.mrb[0].mxu0
        %v516 = vadd.f32 %v364, %v515
        %v517 = vpop.f32.mrb[0].mxu0
        %v518 = vadd.f32 %v360, %v517
        %v519 = vpop.f32.mrb[0].mxu0
        %v520 = vadd.f32 %v364, %v519
        %521 = vmatprep.mubr.bf16.mxu0 0
        %522 = vmatmul.mubr.bf16.gmra.mrb[0].mxu0 %v464
        %v523 = vpop.f32.mrb[0].mxu0
        %v524 = vadd.f32 %v360, %v523
        %v525 = vpop.f32.mrb[0].mxu0
        %v526 = vadd.f32 %v364, %v525
        %v527 = vpop.f32.mrb[0].mxu0
        %v528 = vadd.f32 %v360, %v527
        %v529 = vpop.f32.mrb[0].mxu0
        %v530 = vadd.f32 %v364, %v529
        %531 = vmatprep.mubr.bf16.mxu0 0
        %532 = vmatmul.mubr.bf16.gmra.mrb[0].mxu0 %v467
        %v533 = vpop.f32.mrb[0].mxu0
        %v534 = vadd.f32 %v360, %v533
        %v535 = vpop.f32.mrb[0].mxu0
        %v536 = vadd.f32 %v364, %v535
        %v537 = vpop.f32.mrb[0].mxu0
        %v538 = vadd.f32 %v360, %v537
        %v539 = vpop.f32.mrb[0].mxu0
        %v540 = vadd.f32 %v364, %v539
        %541 = vdwg.mxu0
        %542 = vmatprep.subr.bf16.mxu0 0
        %543 = vmatpush1.bf16.msra.mxu0 %v434
        %544 = vmatprep.subr.bf16.mxu0 0
        %545 = vmatpush1.bf16.msra.mxu0 %v437
        %546 = vmatprep.subr.bf16.mxu0 0
        %547 = vmatpush1.bf16.msra.mxu0 %v440
        %548 = vmatprep.subr.bf16.mxu0 0
        %549 = vmatpush1.bf16.msra.mxu0 %v443
        %550 = vmatprep.subr.bf16.mxu0 0
        %551 = vmatpush1.bf16.msra.mxu0 0
        %552 = vmatprep.subr.bf16.mxu0 0
        %553 = vmatpush1.bf16.msra.mxu0 0
        %554 = vmatprep.subr.bf16.mxu0 0
        %555 = vmatpush1.bf16.msra.mxu0 0
        %556 = vmatprep.subr.bf16.mxu0 0
        %557 = vmatpush1.bf16.msra.mxu0 0
        %558 = vmatprep.subr.bf16.mxu0 0
        %559 = vmatpush1.bf16.msra.mxu0 0
        %560 = vmatprep.subr.bf16.mxu0 0
        %561 = vmatpush1.bf16.msra.mxu0 0
        %562 = vmatprep.subr.bf16.mxu0 0
        %563 = vmatpush1.bf16.msra.mxu0 0
        %564 = vmatprep.subr.bf16.mxu0 0
        %565 = vmatpush1.bf16.msra.mxu0 0
        %566 = vmatprep.subr.bf16.mxu0 0
        %567 = vmatpush1.bf16.msra.mxu0 0
        %568 = vmatprep.subr.bf16.mxu0 0
        %569 = vmatpush1.bf16.msra.mxu0 0
        %570 = vmatprep.subr.bf16.mxu0 0
        %571 = vmatpush1.bf16.msra.mxu0 0
        %572 = vmatprep.subr.bf16.mxu0 0
        %573 = vmatpush1.bf16.msra.mxu0 0
        %574 = vmatprep.mubr.bf16.mxu0 0
        %575 = vmatmul.mubr.bf16.gmra.mrb[0].mxu0 %v458
        %v576 = vpop.f32.mrb[0].mxu0
        %v577 = vadd.f32 %v368, %v576
        %v578 = vpop.f32.mrb[0].mxu0
        %v579 = vpop.f32.mrb[0].mxu0
        %v580 = vadd.f32 %v368, %v579
        %v581 = vpop.f32.mrb[0].mxu0
        %582 = vmatprep.mubr.bf16.mxu0 0
        %583 = vmatmul.mubr.bf16.gmra.mrb[0].mxu0 %v461
        %v584 = vpop.f32.mrb[0].mxu0
        %v585 = vadd.f32 %v368, %v584
        %v586 = vpop.f32.mrb[0].mxu0
        %v587 = vpop.f32.mrb[0].mxu0
        %v588 = vadd.f32 %v368, %v587
        %v589 = vpop.f32.mrb[0].mxu0
        %590 = vmatprep.mubr.bf16.mxu0 0
        %591 = vmatmul.mubr.bf16.gmra.mrb[0].mxu0 %v464
        %v592 = vpop.f32.mrb[0].mxu0
        %v593 = vadd.f32 %v368, %v592
        %v594 = vpop.f32.mrb[0].mxu0
        %v595 = vpop.f32.mrb[0].mxu0
        %v596 = vadd.f32 %v368, %v595
        %v597 = vpop.f32.mrb[0].mxu0
        %598 = vmatprep.mubr.bf16.mxu0 0
        %599 = vmatmul.mubr.bf16.gmra.mrb[0].mxu0 %v467
        %v600 = vpop.f32.mrb[0].mxu0
        %v601 = vadd.f32 %v368, %v600
        %v602 = vpop.f32.mrb[0].mxu0
        %v603 = vpop.f32.mrb[0].mxu0
        %v604 = vadd.f32 %v368, %v603
        %v605 = vpop.f32.mrb[0].mxu0
        %606 = vdwg.mxu0
        %607 = vst [vmem:[#allocation3] sm:$0xff] %v504
        %608 = vst [vmem:[#allocation3 + $0x8] sm:$0xff] %v506
        %609 = vst [vmem:[#allocation3 + $0x10] sm:$0xff] %v577
        %610 = vst [vmem:[#allocation3 + $0x18] sm:$0xff] %v508
        %611 = vst [vmem:[#allocation3 + $0x20] sm:$0xff] %v510
        %612 = vst [vmem:[#allocation3 + $0x28] sm:$0xff] %v580
        %613 = vst [vmem:[#allocation3 + $0x30] sm:$0xff] %v514
        %614 = vst [vmem:[#allocation3 + $0x38] sm:$0xff] %v516
        %615 = vst [vmem:[#allocation3 + $0x40] sm:$0xff] %v585
        %616 = vst [vmem:[#allocation3 + $0x48] sm:$0xff] %v518
        %617 = vst [vmem:[#allocation3 + $0x50] sm:$0xff] %v520
        %618 = vst [vmem:[#allocation3 + $0x58] sm:$0xff] %v588
        %619 = vst [vmem:[#allocation3 + $0x60] sm:$0xff] %v524
        %620 = vst [vmem:[#allocation3 + $0x68] sm:$0xff] %v526
        %621 = vst [vmem:[#allocation3 + $0x70] sm:$0xff] %v593
        %622 = vst [vmem:[#allocation3 + $0x78] sm:$0xff] %v528
        %623 = vst [vmem:[#allocation3 + $0x80] sm:$0xff] %v530
        %624 = vst [vmem:[#allocation3 + $0x88] sm:$0xff] %v596
        %625 = vst [vmem:[#allocation3 + $0x90] sm:$0xff] %v534
        %626 = vst [vmem:[#allocation3 + $0x98] sm:$0xff] %v536
        %627 = vst [vmem:[#allocation3 + $0xa0] sm:$0xff] %v601
        %628 = vst [vmem:[#allocation3 + $0xa8] sm:$0xff] %v538
        %629 = vst [vmem:[#allocation3 + $0xb0] sm:$0xff] %v540
        %630 = vst [vmem:[#allocation3 + $0xb8] sm:$0xff] %v604
        %v631 = vld [vmem:[%s324] sm:$0xff]
        %s632 = smul.u32 %s27, 8
        %v633 = vld [vmem:[#allocation2] sm:$0xff]
        %s634 = smul.u32 0, 3
        %s635 = smul.addr %s634, 8
        %s636 = scalar_lea.vmem [#allocation3], %s635
        %v637 = vld [vmem:[%s636] sm:$0xff]
        %v638 = vld [vmem:[%s636 + $0x8] sm:$0xff]
        %v639 = vld [vmem:[%s636 + $0x10] sm:$0xff]
        %v640 = vpack.c.bf16 %v633, %v633
        %v641 = vld [vmem:[#allocation9] sm:$0xff]
        %v642 = vld [vmem:[#allocation9 + $0x8] sm:$0xf]
        %v643 = vld [vmem:[#allocation9 + $0xc] sm:$0xff]
        %v644 = vld [vmem:[#allocation9 + $0x14] sm:$0xf]
        %v645 = vld [vmem:[#allocation9 + $0x18] sm:$0xff]
        %v646 = vld [vmem:[#allocation9 + $0x20] sm:$0xf]
        %v647 = vld [vmem:[#allocation9 + $0x24] sm:$0xff]
        %v648 = vld [vmem:[#allocation9 + $0x2c] sm:$0xf]
        %v649 = vld [vmem:[#allocation9 + $0x30] sm:$0xff]
        %v650 = vld [vmem:[#allocation9 + $0x38] sm:$0xf]
        %v651 = vld [vmem:[#allocation9 + $0x3c] sm:$0xff]
        %v652 = vld [vmem:[#allocation9 + $0x44] sm:$0xf]
        %v653 = vld [vmem:[#allocation9 + $0x48] sm:$0xff]
        %v654 = vld [vmem:[#allocation9 + $0x50] sm:$0xf]
        %v655 = vld [vmem:[#allocation9 + $0x54] sm:$0xff]
        %v656 = vld [vmem:[#allocation9 + $0x5c] sm:$0xf]
        %v657 = vld [vmem:[#allocation9 + $0x60] sm:$0xff]
        %v658 = vld [vmem:[#allocation9 + $0x68] sm:$0xf]
        %v659 = vld [vmem:[#allocation9 + $0x6c] sm:$0xff]
        %v660 = vld [vmem:[#allocation9 + $0x74] sm:$0xf]
        %v661 = vld [vmem:[#allocation9 + $0x78] sm:$0xff]
        %v662 = vld [vmem:[#allocation9 + $0x80] sm:$0xf]
        %v663 = vld [vmem:[#allocation9 + $0x84] sm:$0xff]
        %v664 = vld [vmem:[#allocation9 + $0x8c] sm:$0xf]
        %v665 = vld [vmem:[#allocation9 + $0x90] sm:$0xff]
        %v666 = vld [vmem:[#allocation9 + $0x98] sm:$0xf]
        %v667 = vld [vmem:[#allocation9 + $0x9c] sm:$0xff]
        %v668 = vld [vmem:[#allocation9 + $0xa4] sm:$0xf]
        %v669 = vld [vmem:[#allocation9 + $0xa8] sm:$0xff]
        %v670 = vld [vmem:[#allocation9 + $0xb0] sm:$0xf]
        %v671 = vld [vmem:[#allocation9 + $0xb4] sm:$0xff]
        %v672 = vld [vmem:[#allocation9 + $0xbc] sm:$0xf]
        %v673 = vld [vmem:[%s5] sm:$0x7]
        %v675 = vlaneseq
        %v676 = vshrl.u32 %v675, 7
        %v677 = vsub.s32 0, %v676
        %v678 = vrot.slane %v673, %v677
        %v679 = vlaneseq
        %v680 = vshrl.u32 %v679, 7
        %v681 = vsub.s32 1, %v680
        %v682 = vrot.slane %v673, %v681
        %v683 = vlaneseq
        %v684 = vshrl.u32 %v683, 7
        %v685 = vsub.s32 2, %v684
        %v686 = vrot.slane %v673, %v685
        %v722 = vunpack.c.l.b16 %v641
        %v723 = vunpack.c.h.b16 %v641
        %v724 = vunpack.c.l.b16 %v642
        %v725 = vunpack.c.l.b16 %v643
        %v726 = vunpack.c.h.b16 %v643
        %v727 = vunpack.c.l.b16 %v644
        %v728 = vunpack.c.l.b16 %v645
        %v729 = vunpack.c.h.b16 %v645
        %v730 = vunpack.c.l.b16 %v646
        %v731 = vunpack.c.l.b16 %v647
        %v732 = vunpack.c.h.b16 %v647
        %v733 = vunpack.c.l.b16 %v648
        %v734 = vunpack.c.l.b16 %v649
        %v735 = vunpack.c.h.b16 %v649
        %v736 = vunpack.c.l.b16 %v650
        %v737 = vunpack.c.l.b16 %v651
        %v738 = vunpack.c.h.b16 %v651
        %v739 = vunpack.c.l.b16 %v652
        %v740 = vunpack.c.l.b16 %v653
        %v741 = vunpack.c.h.b16 %v653
        %v742 = vunpack.c.l.b16 %v654
        %v743 = vunpack.c.l.b16 %v655
        %v744 = vunpack.c.h.b16 %v655
        %v745 = vunpack.c.l.b16 %v656
        %v746 = vunpack.c.l.b16 %v657
        %v747 = vunpack.c.h.b16 %v657
        %v748 = vunpack.c.l.b16 %v658
        %v749 = vunpack.c.l.b16 %v659
        %v750 = vunpack.c.h.b16 %v659
        %v751 = vunpack.c.l.b16 %v660
        %v752 = vunpack.c.l.b16 %v661
        %v753 = vunpack.c.h.b16 %v661
        %v754 = vunpack.c.l.b16 %v662
        %v755 = vunpack.c.l.b16 %v663
        %v756 = vunpack.c.h.b16 %v663
        %v757 = vunpack.c.l.b16 %v664
        %v758 = vunpack.c.l.b16 %v665
        %v759 = vunpack.c.h.b16 %v665
        %v760 = vunpack.c.l.b16 %v666
        %v761 = vunpack.c.l.b16 %v667
        %v762 = vunpack.c.h.b16 %v667
        %v763 = vunpack.c.l.b16 %v668
        %v764 = vunpack.c.l.b16 %v669
        %v765 = vunpack.c.h.b16 %v669
        %v766 = vunpack.c.l.b16 %v670
        %v767 = vunpack.c.l.b16 %v671
        %v768 = vunpack.c.h.b16 %v671
        %v769 = vunpack.c.l.b16 %v672
        %v770 = vpack.c.b16 %v725, %v722
        %v771 = vpack.c.b16 %v726, %v723
        %v772 = vpack.c.b16 %v727, %v724
        %v773 = vpack.c.b16 %v731, %v728
        %v774 = vpack.c.b16 %v732, %v729
        %v775 = vpack.c.b16 %v733, %v730
        %v776 = vpack.c.b16 %v737, %v734
        %v777 = vpack.c.b16 %v738, %v735
        %v778 = vpack.c.b16 %v739, %v736
        %v779 = vpack.c.b16 %v743, %v740
        %v780 = vpack.c.b16 %v744, %v741
        %v781 = vpack.c.b16 %v745, %v742
        %v782 = vpack.c.b16 %v749, %v746
        %v783 = vpack.c.b16 %v750, %v747
        %v784 = vpack.c.b16 %v751, %v748
        %v785 = vpack.c.b16 %v755, %v752
        %v786 = vpack.c.b16 %v756, %v753
        %v787 = vpack.c.b16 %v757, %v754
        %v788 = vpack.c.b16 %v761, %v758
        %v789 = vpack.c.b16 %v762, %v759
        %v790 = vpack.c.b16 %v763, %v760
        %v791 = vpack.c.b16 %v767, %v764
        %v792 = vpack.c.b16 %v768, %v765
        %v793 = vpack.c.b16 %v769, %v766
        %818 = vmatprep.subr.bf16.mxu0 %v771
        %819 = vmatpush1.bf16.msra.mxu0 %v770
        %820 = vmatprep.subr.bf16.mxu0 %v774
        %821 = vmatpush1.bf16.msra.mxu0 %v773
        %822 = vmatprep.subr.bf16.mxu0 %v777
        %823 = vmatpush1.bf16.msra.mxu0 %v776
        %824 = vmatprep.subr.bf16.mxu0 %v780
        %825 = vmatpush1.bf16.msra.mxu0 %v779
        %826 = vmatprep.subr.bf16.mxu0 %v783
        %827 = vmatpush1.bf16.msra.mxu0 %v782
        %828 = vmatprep.subr.bf16.mxu0 %v786
        %829 = vmatpush1.bf16.msra.mxu0 %v785
        %830 = vmatprep.subr.bf16.mxu0 %v789
        %831 = vmatpush1.bf16.msra.mxu0 %v788
        %832 = vmatprep.subr.bf16.mxu0 %v792
        %833 = vmatpush1.bf16.msra.mxu0 %v791
        %834 = vmatprep.subr.bf16.mxu0 0
        %835 = vmatpush1.bf16.msra.mxu0 0
        %836 = vmatprep.subr.bf16.mxu0 0
        %837 = vmatpush1.bf16.msra.mxu0 0
        %838 = vmatprep.subr.bf16.mxu0 0
        %839 = vmatpush1.bf16.msra.mxu0 0
        %840 = vmatprep.subr.bf16.mxu0 0
        %841 = vmatpush1.bf16.msra.mxu0 0
        %842 = vmatprep.subr.bf16.mxu0 0
        %843 = vmatpush1.bf16.msra.mxu0 0
        %844 = vmatprep.subr.bf16.mxu0 0
        %845 = vmatpush1.bf16.msra.mxu0 0
        %846 = vmatprep.subr.bf16.mxu0 0
        %847 = vmatpush1.bf16.msra.mxu0 0
        %848 = vmatprep.subr.bf16.mxu0 0
        %849 = vmatpush1.bf16.msra.mxu0 0
        %850 = vmatprep.mubr.bf16.mxu0 0
        %851 = vmatmul.mubr.bf16.gmra.mrb[0].mxu0 %v640
        %v852 = vpop.f32.mrb[0].mxu0
        %v853 = vadd.f32 %v678, %v852
        %v854 = vpop.f32.mrb[0].mxu0
        %v855 = vadd.f32 %v682, %v854
        %v856 = vpop.f32.mrb[0].mxu0
        %v857 = vpop.f32.mrb[0].mxu0
        %858 = vdwg.mxu0
        %859 = vmatprep.subr.bf16.mxu0 0
        %860 = vmatpush1.bf16.msra.mxu0 %v772
        %861 = vmatprep.subr.bf16.mxu0 0
        %862 = vmatpush1.bf16.msra.mxu0 %v775
        %863 = vmatprep.subr.bf16.mxu0 0
        %864 = vmatpush1.bf16.msra.mxu0 %v778
        %865 = vmatprep.subr.bf16.mxu0 0
        %866 = vmatpush1.bf16.msra.mxu0 %v781
        %867 = vmatprep.subr.bf16.mxu0 0
        %868 = vmatpush1.bf16.msra.mxu0 %v784
        %869 = vmatprep.subr.bf16.mxu0 0
        %870 = vmatpush1.bf16.msra.mxu0 %v787
        %871 = vmatprep.subr.bf16.mxu0 0
        %872 = vmatpush1.bf16.msra.mxu0 %v790
        %873 = vmatprep.subr.bf16.mxu0 0
        %874 = vmatpush1.bf16.msra.mxu0 %v793
        %875 = vmatprep.subr.bf16.mxu0 0
        %876 = vmatpush1.bf16.msra.mxu0 0
        %877 = vmatprep.subr.bf16.mxu0 0
        %878 = vmatpush1.bf16.msra.mxu0 0
        %879 = vmatprep.subr.bf16.mxu0 0
        %880 = vmatpush1.bf16.msra.mxu0 0
        %881 = vmatprep.subr.bf16.mxu0 0
        %882 = vmatpush1.bf16.msra.mxu0 0
        %883 = vmatprep.subr.bf16.mxu0 0
        %884 = vmatpush1.bf16.msra.mxu0 0
        %885 = vmatprep.subr.bf16.mxu0 0
        %886 = vmatpush1.bf16.msra.mxu0 0
        %887 = vmatprep.subr.bf16.mxu0 0
        %888 = vmatpush1.bf16.msra.mxu0 0
        %889 = vmatprep.subr.bf16.mxu0 0
        %890 = vmatpush1.bf16.msra.mxu0 0
        %891 = vmatprep.mubr.bf16.mxu0 0
        %892 = vmatmul.mubr.bf16.gmra.mrb[0].mxu0 %v640
        %v893 = vpop.f32.mrb[0].mxu0
        %v894 = vadd.f32 %v686, %v893
        %v895 = vpop.f32.mrb[0].mxu0
        %v896 = vpop.f32.mrb[0].mxu0
        %v897 = vpop.f32.mrb[0].mxu0
        %898 = vdwg.mxu0
        %v899 = vadd.f32 %v637, %v853
        %v900 = vxor.u32 %v899, 2147483648
        %v901 = vmul.f32 %v900, 1.442695
        %v902 = vpow.pop %v901
        %v903 = vadd.f32 %v902, 1.0
        %v904 = vrcp.pop %v903
        %v905 = vmul.f32 1.0, %v904
        %v906 = vadd.f32 %v638, %v855
        %v907 = vxor.u32 %v906, 2147483648
        %v908 = vmul.f32 %v907, 1.442695
        %v909 = vpow.pop %v908
        %v910 = vadd.f32 %v909, 1.0
        %v911 = vrcp.pop %v910
        %v912 = vmul.f32 1.0, %v911
        %v913 = vmul.f32 %v905, %v894
        %v914 = vadd.f32 %v639, %v913
        %v915 = vtanh.pop %v914
        %v916 = vstv %s632
        %vm917 = vcmp.lt.s32.totalorder %v916, %v631
        %v918 = vsel %vm917, 1, 0
        %919 = vset.pattern.permute.xlu0 0
        %920 = vperm.xlu0 %919, %v918
        %v921 = vpop.permute.xlu0 %920
        %vm922 = vcmp.eq.s32.totalorder %v921, 1
        %v923 = vsel %vm922, %v912, 1.0
        %v924 = vsub.f32 1.0, %v923
        %v925 = vmul.f32 %v924, %v915
        %v926 = vmul.f32 %v923, %v633
        %v927 = vadd.f32 %v925, %v926
        %s928 = smul.u32 1, 3
        %s929 = smul.addr %s928, 8
        %s930 = scalar_lea.vmem [#allocation3], %s929
        %v931 = vld [vmem:[%s930] sm:$0xff]
        %v932 = vld [vmem:[%s930 + $0x8] sm:$0xff]
        %v933 = vld [vmem:[%s930 + $0x10] sm:$0xff]
        %v934 = vpack.c.bf16 %v927, %v927
        %935 = vmatprep.subr.bf16.mxu0 %v771
        %936 = vmatpush1.bf16.msra.mxu0 %v770
        %937 = vmatprep.subr.bf16.mxu0 %v774
        %938 = vmatpush1.bf16.msra.mxu0 %v773
        %939 = vmatprep.subr.bf16.mxu0 %v777
        %940 = vmatpush1.bf16.msra.mxu0 %v776
        %941 = vmatprep.subr.bf16.mxu0 %v780
        %942 = vmatpush1.bf16.msra.mxu0 %v779
        %943 = vmatprep.subr.bf16.mxu0 %v783
        %944 = vmatpush1.bf16.msra.mxu0 %v782
        %945 = vmatprep.subr.bf16.mxu0 %v786
        %946 = vmatpush1.bf16.msra.mxu0 %v785
        %947 = vmatprep.subr.bf16.mxu0 %v789
        %948 = vmatpush1.bf16.msra.mxu0 %v788
        %949 = vmatprep.subr.bf16.mxu0 %v792
        %950 = vmatpush1.bf16.msra.mxu0 %v791
        %951 = vmatprep.subr.bf16.mxu0 0
        %952 = vmatpush1.bf16.msra.mxu0 0
        %953 = vmatprep.subr.bf16.mxu0 0
        %954 = vmatpush1.bf16.msra.mxu0 0
        %955 = vmatprep.subr.bf16.mxu0 0
        %956 = vmatpush1.bf16.msra.mxu0 0
        %957 = vmatprep.subr.bf16.mxu0 0
        %958 = vmatpush1.bf16.msra.mxu0 0
        %959 = vmatprep.subr.bf16.mxu0 0
        %960 = vmatpush1.bf16.msra.mxu0 0
        %961 = vmatprep.subr.bf16.mxu0 0
        %962 = vmatpush1.bf16.msra.mxu0 0
        %963 = vmatprep.subr.bf16.mxu0 0
        %964 = vmatpush1.bf16.msra.mxu0 0
        %965 = vmatprep.subr.bf16.mxu0 0
        %966 = vmatpush1.bf16.msra.mxu0 0
        %967 = vmatprep.mubr.bf16.mxu0 0
        %968 = vmatmul.mubr.bf16.gmra.mrb[0].mxu0 %v934
        %v969 = vpop.f32.mrb[0].mxu0
        %v970 = vadd.f32 %v678, %v969
        %v971 = vpop.f32.mrb[0].mxu0
        %v972 = vadd.f32 %v682, %v971
        %v973 = vpop.f32.mrb[0].mxu0
        %v974 = vpop.f32.mrb[0].mxu0
        %975 = vdwg.mxu0
        %976 = vmatprep.subr.bf16.mxu0 0
        %977 = vmatpush1.bf16.msra.mxu0 %v772
        %978 = vmatprep.subr.bf16.mxu0 0
        %979 = vmatpush1.bf16.msra.mxu0 %v775
        %980 = vmatprep.subr.bf16.mxu0 0
        %981 = vmatpush1.bf16.msra.mxu0 %v778
        %982 = vmatprep.subr.bf16.mxu0 0
        %983 = vmatpush1.bf16.msra.mxu0 %v781
        %984 = vmatprep.subr.bf16.mxu0 0
        %985 = vmatpush1.bf16.msra.mxu0 %v784
        %986 = vmatprep.subr.bf16.mxu0 0
        %987 = vmatpush1.bf16.msra.mxu0 %v787
        %988 = vmatprep.subr.bf16.mxu0 0
        %989 = vmatpush1.bf16.msra.mxu0 %v790
        %990 = vmatprep.subr.bf16.mxu0 0
        %991 = vmatpush1.bf16.msra.mxu0 %v793
        %992 = vmatprep.subr.bf16.mxu0 0
        %993 = vmatpush1.bf16.msra.mxu0 0
        %994 = vmatprep.subr.bf16.mxu0 0
        %995 = vmatpush1.bf16.msra.mxu0 0
        %996 = vmatprep.subr.bf16.mxu0 0
        %997 = vmatpush1.bf16.msra.mxu0 0
        %998 = vmatprep.subr.bf16.mxu0 0
        %999 = vmatpush1.bf16.msra.mxu0 0
        %1000 = vmatprep.subr.bf16.mxu0 0
        %1001 = vmatpush1.bf16.msra.mxu0 0
        %1002 = vmatprep.subr.bf16.mxu0 0
        %1003 = vmatpush1.bf16.msra.mxu0 0
        %1004 = vmatprep.subr.bf16.mxu0 0
        %1005 = vmatpush1.bf16.msra.mxu0 0
        %1006 = vmatprep.subr.bf16.mxu0 0
        %1007 = vmatpush1.bf16.msra.mxu0 0
        %1008 = vmatprep.mubr.bf16.mxu0 0
        %1009 = vmatmul.mubr.bf16.gmra.mrb[0].mxu0 %v934
        %v1010 = vpop.f32.mrb[0].mxu0
        %v1011 = vadd.f32 %v686, %v1010
        %v1012 = vpop.f32.mrb[0].mxu0
        %v1013 = vpop.f32.mrb[0].mxu0
        %v1014 = vpop.f32.mrb[0].mxu0
        %1015 = vdwg.mxu0
        %v1016 = vadd.f32 %v931, %v970
        %v1017 = vxor.u32 %v1016, 2147483648
        %v1018 = vmul.f32 %v1017, 1.442695
        %v1019 = vpow.pop %v1018
        %v1020 = vadd.f32 %v1019, 1.0
        %v1021 = vrcp.pop %v1020
        %v1022 = vmul.f32 1.0, %v1021
        %v1023 = vadd.f32 %v932, %v972
        %v1024 = vxor.u32 %v1023, 2147483648
        %v1025 = vmul.f32 %v1024, 1.442695
        %v1026 = vpow.pop %v1025
        %v1027 = vadd.f32 %v1026, 1.0
        %v1028 = vrcp.pop %v1027
        %v1029 = vmul.f32 1.0, %v1028
        %v1030 = vmul.f32 %v1022, %v1011
        %v1031 = vadd.f32 %v933, %v1030
        %v1032 = vtanh.pop %v1031
        %s1033 = sadd.s32 %s632, 1
        %v1034 = vstv %s1033
        %vm1035 = vcmp.lt.s32.totalorder %v1034, %v631
        %v1036 = vsel %vm1035, 1, 0
        %1037 = vset.pattern.permute.xlu0 0
        %1038 = vperm.xlu0 %1037, %v1036
        %v1039 = vpop.permute.xlu0 %1038
        %vm1040 = vcmp.eq.s32.totalorder %v1039, 1
        %v1041 = vsel %vm1040, %v1029, 1.0
        %v1042 = vsub.f32 1.0, %v1041
        %v1043 = vmul.f32 %v1042, %v1032
        %v1044 = vmul.f32 %v1041, %v927
        %v1045 = vadd.f32 %v1043, %v1044
        %s1046 = smul.u32 2, 3
        %s1047 = smul.addr %s1046, 8
        %s1048 = scalar_lea.vmem [#allocation3], %s1047
        %v1049 = vld [vmem:[%s1048] sm:$0xff]
        %v1050 = vld [vmem:[%s1048 + $0x8] sm:$0xff]
        %v1051 = vld [vmem:[%s1048 + $0x10] sm:$0xff]
        %v1052 = vpack.c.bf16 %v1045, %v1045
        %1053 = vmatprep.subr.bf16.mxu0 %v771
        %1054 = vmatpush1.bf16.msra.mxu0 %v770
        %1055 = vmatprep.subr.bf16.mxu0 %v774
        %1056 = vmatpush1.bf16.msra.mxu0 %v773
        %1057 = vmatprep.subr.bf16.mxu0 %v777
        %1058 = vmatpush1.bf16.msra.mxu0 %v776
        %1059 = vmatprep.subr.bf16.mxu0 %v780
        %1060 = vmatpush1.bf16.msra.mxu0 %v779
        %1061 = vmatprep.subr.bf16.mxu0 %v783
        %1062 = vmatpush1.bf16.msra.mxu0 %v782
        %1063 = vmatprep.subr.bf16.mxu0 %v786
        %1064 = vmatpush1.bf16.msra.mxu0 %v785
        %1065 = vmatprep.subr.bf16.mxu0 %v789
        %1066 = vmatpush1.bf16.msra.mxu0 %v788
        %1067 = vmatprep.subr.bf16.mxu0 %v792
        %1068 = vmatpush1.bf16.msra.mxu0 %v791
        %1069 = vmatprep.subr.bf16.mxu0 0
        %1070 = vmatpush1.bf16.msra.mxu0 0
        %1071 = vmatprep.subr.bf16.mxu0 0
        %1072 = vmatpush1.bf16.msra.mxu0 0
        %1073 = vmatprep.subr.bf16.mxu0 0
        %1074 = vmatpush1.bf16.msra.mxu0 0
        %1075 = vmatprep.subr.bf16.mxu0 0
        %1076 = vmatpush1.bf16.msra.mxu0 0
        %1077 = vmatprep.subr.bf16.mxu0 0
        %1078 = vmatpush1.bf16.msra.mxu0 0
        %1079 = vmatprep.subr.bf16.mxu0 0
        %1080 = vmatpush1.bf16.msra.mxu0 0
        %1081 = vmatprep.subr.bf16.mxu0 0
        %1082 = vmatpush1.bf16.msra.mxu0 0
        %1083 = vmatprep.subr.bf16.mxu0 0
        %1084 = vmatpush1.bf16.msra.mxu0 0
        %1085 = vmatprep.mubr.bf16.mxu0 0
        %1086 = vmatmul.mubr.bf16.gmra.mrb[0].mxu0 %v1052
        %v1087 = vpop.f32.mrb[0].mxu0
        %v1088 = vadd.f32 %v678, %v1087
        %v1089 = vpop.f32.mrb[0].mxu0
        %v1090 = vadd.f32 %v682, %v1089
        %v1091 = vpop.f32.mrb[0].mxu0
        %v1092 = vpop.f32.mrb[0].mxu0
        %1093 = vdwg.mxu0
        %1094 = vmatprep.subr.bf16.mxu0 0
        %1095 = vmatpush1.bf16.msra.mxu0 %v772
        %1096 = vmatprep.subr.bf16.mxu0 0
        %1097 = vmatpush1.bf16.msra.mxu0 %v775
        %1098 = vmatprep.subr.bf16.mxu0 0
        %1099 = vmatpush1.bf16.msra.mxu0 %v778
        %1100 = vmatprep.subr.bf16.mxu0 0
        %1101 = vmatpush1.bf16.msra.mxu0 %v781
        %1102 = vmatprep.subr.bf16.mxu0 0
        %1103 = vmatpush1.bf16.msra.mxu0 %v784
        %1104 = vmatprep.subr.bf16.mxu0 0
        %1105 = vmatpush1.bf16.msra.mxu0 %v787
        %1106 = vmatprep.subr.bf16.mxu0 0
        %1107 = vmatpush1.bf16.msra.mxu0 %v790
        %1108 = vmatprep.subr.bf16.mxu0 0
        %1109 = vmatpush1.bf16.msra.mxu0 %v793
        %1110 = vmatprep.subr.bf16.mxu0 0
        %1111 = vmatpush1.bf16.msra.mxu0 0
        %1112 = vmatprep.subr.bf16.mxu0 0
        %1113 = vmatpush1.bf16.msra.mxu0 0
        %1114 = vmatprep.subr.bf16.mxu0 0
        %1115 = vmatpush1.bf16.msra.mxu0 0
        %1116 = vmatprep.subr.bf16.mxu0 0
        %1117 = vmatpush1.bf16.msra.mxu0 0
        %1118 = vmatprep.subr.bf16.mxu0 0
        %1119 = vmatpush1.bf16.msra.mxu0 0
        %1120 = vmatprep.subr.bf16.mxu0 0
        %1121 = vmatpush1.bf16.msra.mxu0 0
        %1122 = vmatprep.subr.bf16.mxu0 0
        %1123 = vmatpush1.bf16.msra.mxu0 0
        %1124 = vmatprep.subr.bf16.mxu0 0
        %1125 = vmatpush1.bf16.msra.mxu0 0
        %1126 = vmatprep.mubr.bf16.mxu0 0
        %1127 = vmatmul.mubr.bf16.gmra.mrb[0].mxu0 %v1052
        %v1128 = vpop.f32.mrb[0].mxu0
        %v1129 = vadd.f32 %v686, %v1128
        %v1130 = vpop.f32.mrb[0].mxu0
        %v1131 = vpop.f32.mrb[0].mxu0
        %v1132 = vpop.f32.mrb[0].mxu0
        %1133 = vdwg.mxu0
        %v1134 = vadd.f32 %v1049, %v1088
        %v1135 = vxor.u32 %v1134, 2147483648
        %v1136 = vmul.f32 %v1135, 1.442695
        %v1137 = vpow.pop %v1136
        %v1138 = vadd.f32 %v1137, 1.0
        %v1139 = vrcp.pop %v1138
        %v1140 = vmul.f32 1.0, %v1139
        %v1141 = vadd.f32 %v1050, %v1090
        %v1142 = vxor.u32 %v1141, 2147483648
        %v1143 = vmul.f32 %v1142, 1.442695
        %v1144 = vpow.pop %v1143
        %v1145 = vadd.f32 %v1144, 1.0
        %v1146 = vrcp.pop %v1145
        %v1147 = vmul.f32 1.0, %v1146
        %v1148 = vmul.f32 %v1140, %v1129
        %v1149 = vadd.f32 %v1051, %v1148
        %v1150 = vtanh.pop %v1149
        %s1151 = sadd.s32 %s632, 2
        %v1152 = vstv %s1151
        %vm1153 = vcmp.lt.s32.totalorder %v1152, %v631
        %v1154 = vsel %vm1153, 1, 0
        %1155 = vset.pattern.permute.xlu0 0
        %1156 = vperm.xlu0 %1155, %v1154
        %v1157 = vpop.permute.xlu0 %1156
        %vm1158 = vcmp.eq.s32.totalorder %v1157, 1
        %v1159 = vsel %vm1158, %v1147, 1.0
        %v1160 = vsub.f32 1.0, %v1159
        %v1161 = vmul.f32 %v1160, %v1150
        %v1162 = vmul.f32 %v1159, %v1045
        %v1163 = vadd.f32 %v1161, %v1162
        %s1164 = smul.u32 3, 3
        %s1165 = smul.addr %s1164, 8
        %s1166 = scalar_lea.vmem [#allocation3], %s1165
        %v1167 = vld [vmem:[%s1166] sm:$0xff]
        %v1168 = vld [vmem:[%s1166 + $0x8] sm:$0xff]
        %v1169 = vld [vmem:[%s1166 + $0x10] sm:$0xff]
        %v1170 = vpack.c.bf16 %v1163, %v1163
        %1171 = vmatprep.subr.bf16.mxu0 %v771
        %1172 = vmatpush1.bf16.msra.mxu0 %v770
        %1173 = vmatprep.subr.bf16.mxu0 %v774
        %1174 = vmatpush1.bf16.msra.mxu0 %v773
        %1175 = vmatprep.subr.bf16.mxu0 %v777
        %1176 = vmatpush1.bf16.msra.mxu0 %v776
        %1177 = vmatprep.subr.bf16.mxu0 %v780
        %1178 = vmatpush1.bf16.msra.mxu0 %v779
        %1179 = vmatprep.subr.bf16.mxu0 %v783
        %1180 = vmatpush1.bf16.msra.mxu0 %v782
        %1181 = vmatprep.subr.bf16.mxu0 %v786
        %1182 = vmatpush1.bf16.msra.mxu0 %v785
        %1183 = vmatprep.subr.bf16.mxu0 %v789
        %1184 = vmatpush1.bf16.msra.mxu0 %v788
        %1185 = vmatprep.subr.bf16.mxu0 %v792
        %1186 = vmatpush1.bf16.msra.mxu0 %v791
        %1187 = vmatprep.subr.bf16.mxu0 0
        %1188 = vmatpush1.bf16.msra.mxu0 0
        %1189 = vmatprep.subr.bf16.mxu0 0
        %1190 = vmatpush1.bf16.msra.mxu0 0
        %1191 = vmatprep.subr.bf16.mxu0 0
        %1192 = vmatpush1.bf16.msra.mxu0 0
        %1193 = vmatprep.subr.bf16.mxu0 0
        %1194 = vmatpush1.bf16.msra.mxu0 0
        %1195 = vmatprep.subr.bf16.mxu0 0
        %1196 = vmatpush1.bf16.msra.mxu0 0
        %1197 = vmatprep.subr.bf16.mxu0 0
        %1198 = vmatpush1.bf16.msra.mxu0 0
        %1199 = vmatprep.subr.bf16.mxu0 0
        %1200 = vmatpush1.bf16.msra.mxu0 0
        %1201 = vmatprep.subr.bf16.mxu0 0
        %1202 = vmatpush1.bf16.msra.mxu0 0
        %1203 = vmatprep.mubr.bf16.mxu0 0
        %1204 = vmatmul.mubr.bf16.gmra.mrb[0].mxu0 %v1170
        %v1205 = vpop.f32.mrb[0].mxu0
        %v1206 = vadd.f32 %v678, %v1205
        %v1207 = vpop.f32.mrb[0].mxu0
        %v1208 = vadd.f32 %v682, %v1207
        %v1209 = vpop.f32.mrb[0].mxu0
        %v1210 = vpop.f32.mrb[0].mxu0
        %1211 = vdwg.mxu0
        %1212 = vmatprep.subr.bf16.mxu0 0
        %1213 = vmatpush1.bf16.msra.mxu0 %v772
        %1214 = vmatprep.subr.bf16.mxu0 0
        %1215 = vmatpush1.bf16.msra.mxu0 %v775
        %1216 = vmatprep.subr.bf16.mxu0 0
        %1217 = vmatpush1.bf16.msra.mxu0 %v778
        %1218 = vmatprep.subr.bf16.mxu0 0
        %1219 = vmatpush1.bf16.msra.mxu0 %v781
        %1220 = vmatprep.subr.bf16.mxu0 0
        %1221 = vmatpush1.bf16.msra.mxu0 %v784
        %1222 = vmatprep.subr.bf16.mxu0 0
        %1223 = vmatpush1.bf16.msra.mxu0 %v787
        %1224 = vmatprep.subr.bf16.mxu0 0
        %1225 = vmatpush1.bf16.msra.mxu0 %v790
        %1226 = vmatprep.subr.bf16.mxu0 0
        %1227 = vmatpush1.bf16.msra.mxu0 %v793
        %1228 = vmatprep.subr.bf16.mxu0 0
        %1229 = vmatpush1.bf16.msra.mxu0 0
        %1230 = vmatprep.subr.bf16.mxu0 0
        %1231 = vmatpush1.bf16.msra.mxu0 0
        %1232 = vmatprep.subr.bf16.mxu0 0
        %1233 = vmatpush1.bf16.msra.mxu0 0
        %1234 = vmatprep.subr.bf16.mxu0 0
        %1235 = vmatpush1.bf16.msra.mxu0 0
        %1236 = vmatprep.subr.bf16.mxu0 0
        %1237 = vmatpush1.bf16.msra.mxu0 0
        %1238 = vmatprep.subr.bf16.mxu0 0
        %1239 = vmatpush1.bf16.msra.mxu0 0
        %1240 = vmatprep.subr.bf16.mxu0 0
        %1241 = vmatpush1.bf16.msra.mxu0 0
        %1242 = vmatprep.subr.bf16.mxu0 0
        %1243 = vmatpush1.bf16.msra.mxu0 0
        %1244 = vmatprep.mubr.bf16.mxu0 0
        %1245 = vmatmul.mubr.bf16.gmra.mrb[0].mxu0 %v1170
        %v1246 = vpop.f32.mrb[0].mxu0
        %v1247 = vadd.f32 %v686, %v1246
        %v1248 = vpop.f32.mrb[0].mxu0
        %v1249 = vpop.f32.mrb[0].mxu0
        %v1250 = vpop.f32.mrb[0].mxu0
        %1251 = vdwg.mxu0
        %v1252 = vadd.f32 %v1167, %v1206
        %v1253 = vxor.u32 %v1252, 2147483648
        %v1254 = vmul.f32 %v1253, 1.442695
        %v1255 = vpow.pop %v1254
        %v1256 = vadd.f32 %v1255, 1.0
        %v1257 = vrcp.pop %v1256
        %v1258 = vmul.f32 1.0, %v1257
        %v1259 = vadd.f32 %v1168, %v1208
        %v1260 = vxor.u32 %v1259, 2147483648
        %v1261 = vmul.f32 %v1260, 1.442695
        %v1262 = vpow.pop %v1261
        %v1263 = vadd.f32 %v1262, 1.0
        %v1264 = vrcp.pop %v1263
        %v1265 = vmul.f32 1.0, %v1264
        %v1266 = vmul.f32 %v1258, %v1247
        %v1267 = vadd.f32 %v1169, %v1266
        %v1268 = vtanh.pop %v1267
        %s1269 = sadd.s32 %s632, 3
        %v1270 = vstv %s1269
        %vm1271 = vcmp.lt.s32.totalorder %v1270, %v631
        %v1272 = vsel %vm1271, 1, 0
        %1273 = vset.pattern.permute.xlu0 0
        %1274 = vperm.xlu0 %1273, %v1272
        %v1275 = vpop.permute.xlu0 %1274
        %vm1276 = vcmp.eq.s32.totalorder %v1275, 1
        %v1277 = vsel %vm1276, %v1265, 1.0
        %v1278 = vsub.f32 1.0, %v1277
        %v1279 = vmul.f32 %v1278, %v1268
        %v1280 = vmul.f32 %v1277, %v1163
        %v1281 = vadd.f32 %v1279, %v1280
        %s1282 = smul.u32 4, 3
        %s1283 = smul.addr %s1282, 8
        %s1284 = scalar_lea.vmem [#allocation3], %s1283
        %v1285 = vld [vmem:[%s1284] sm:$0xff]
        %v1286 = vld [vmem:[%s1284 + $0x8] sm:$0xff]
        %v1287 = vld [vmem:[%s1284 + $0x10] sm:$0xff]
        %v1288 = vpack.c.bf16 %v1281, %v1281
        %1289 = vmatprep.subr.bf16.mxu0 %v771
        %1290 = vmatpush1.bf16.msra.mxu0 %v770
        %1291 = vmatprep.subr.bf16.mxu0 %v774
        %1292 = vmatpush1.bf16.msra.mxu0 %v773
        %1293 = vmatprep.subr.bf16.mxu0 %v777
        %1294 = vmatpush1.bf16.msra.mxu0 %v776
        %1295 = vmatprep.subr.bf16.mxu0 %v780
        %1296 = vmatpush1.bf16.msra.mxu0 %v779
        %1297 = vmatprep.subr.bf16.mxu0 %v783
        %1298 = vmatpush1.bf16.msra.mxu0 %v782
        %1299 = vmatprep.subr.bf16.mxu0 %v786
        %1300 = vmatpush1.bf16.msra.mxu0 %v785
        %1301 = vmatprep.subr.bf16.mxu0 %v789
        %1302 = vmatpush1.bf16.msra.mxu0 %v788
        %1303 = vmatprep.subr.bf16.mxu0 %v792
        %1304 = vmatpush1.bf16.msra.mxu0 %v791
        %1305 = vmatprep.subr.bf16.mxu0 0
        %1306 = vmatpush1.bf16.msra.mxu0 0
        %1307 = vmatprep.subr.bf16.mxu0 0
        %1308 = vmatpush1.bf16.msra.mxu0 0
        %1309 = vmatprep.subr.bf16.mxu0 0
        %1310 = vmatpush1.bf16.msra.mxu0 0
        %1311 = vmatprep.subr.bf16.mxu0 0
        %1312 = vmatpush1.bf16.msra.mxu0 0
        %1313 = vmatprep.subr.bf16.mxu0 0
        %1314 = vmatpush1.bf16.msra.mxu0 0
        %1315 = vmatprep.subr.bf16.mxu0 0
        %1316 = vmatpush1.bf16.msra.mxu0 0
        %1317 = vmatprep.subr.bf16.mxu0 0
        %1318 = vmatpush1.bf16.msra.mxu0 0
        %1319 = vmatprep.subr.bf16.mxu0 0
        %1320 = vmatpush1.bf16.msra.mxu0 0
        %1321 = vmatprep.mubr.bf16.mxu0 0
        %1322 = vmatmul.mubr.bf16.gmra.mrb[0].mxu0 %v1288
        %v1323 = vpop.f32.mrb[0].mxu0
        %v1324 = vadd.f32 %v678, %v1323
        %v1325 = vpop.f32.mrb[0].mxu0
        %v1326 = vadd.f32 %v682, %v1325
        %v1327 = vpop.f32.mrb[0].mxu0
        %v1328 = vpop.f32.mrb[0].mxu0
        %1329 = vdwg.mxu0
        %1330 = vmatprep.subr.bf16.mxu0 0
        %1331 = vmatpush1.bf16.msra.mxu0 %v772
        %1332 = vmatprep.subr.bf16.mxu0 0
        %1333 = vmatpush1.bf16.msra.mxu0 %v775
        %1334 = vmatprep.subr.bf16.mxu0 0
        %1335 = vmatpush1.bf16.msra.mxu0 %v778
        %1336 = vmatprep.subr.bf16.mxu0 0
        %1337 = vmatpush1.bf16.msra.mxu0 %v781
        %1338 = vmatprep.subr.bf16.mxu0 0
        %1339 = vmatpush1.bf16.msra.mxu0 %v784
        %1340 = vmatprep.subr.bf16.mxu0 0
        %1341 = vmatpush1.bf16.msra.mxu0 %v787
        %1342 = vmatprep.subr.bf16.mxu0 0
        %1343 = vmatpush1.bf16.msra.mxu0 %v790
        %1344 = vmatprep.subr.bf16.mxu0 0
        %1345 = vmatpush1.bf16.msra.mxu0 %v793
        %1346 = vmatprep.subr.bf16.mxu0 0
        %1347 = vmatpush1.bf16.msra.mxu0 0
        %1348 = vmatprep.subr.bf16.mxu0 0
        %1349 = vmatpush1.bf16.msra.mxu0 0
        %1350 = vmatprep.subr.bf16.mxu0 0
        %1351 = vmatpush1.bf16.msra.mxu0 0
        %1352 = vmatprep.subr.bf16.mxu0 0
        %1353 = vmatpush1.bf16.msra.mxu0 0
        %1354 = vmatprep.subr.bf16.mxu0 0
        %1355 = vmatpush1.bf16.msra.mxu0 0
        %1356 = vmatprep.subr.bf16.mxu0 0
        %1357 = vmatpush1.bf16.msra.mxu0 0
        %1358 = vmatprep.subr.bf16.mxu0 0
        %1359 = vmatpush1.bf16.msra.mxu0 0
        %1360 = vmatprep.subr.bf16.mxu0 0
        %1361 = vmatpush1.bf16.msra.mxu0 0
        %1362 = vmatprep.mubr.bf16.mxu0 0
        %1363 = vmatmul.mubr.bf16.gmra.mrb[0].mxu0 %v1288
        %v1364 = vpop.f32.mrb[0].mxu0
        %v1365 = vadd.f32 %v686, %v1364
        %v1366 = vpop.f32.mrb[0].mxu0
        %v1367 = vpop.f32.mrb[0].mxu0
        %v1368 = vpop.f32.mrb[0].mxu0
        %1369 = vdwg.mxu0
        %v1370 = vadd.f32 %v1285, %v1324
        %v1371 = vxor.u32 %v1370, 2147483648
        %v1372 = vmul.f32 %v1371, 1.442695
        %v1373 = vpow.pop %v1372
        %v1374 = vadd.f32 %v1373, 1.0
        %v1375 = vrcp.pop %v1374
        %v1376 = vmul.f32 1.0, %v1375
        %v1377 = vadd.f32 %v1286, %v1326
        %v1378 = vxor.u32 %v1377, 2147483648
        %v1379 = vmul.f32 %v1378, 1.442695
        %v1380 = vpow.pop %v1379
        %v1381 = vadd.f32 %v1380, 1.0
        %v1382 = vrcp.pop %v1381
        %v1383 = vmul.f32 1.0, %v1382
        %v1384 = vmul.f32 %v1376, %v1365
        %v1385 = vadd.f32 %v1287, %v1384
        %v1386 = vtanh.pop %v1385
        %s1387 = sadd.s32 %s632, 4
        %v1388 = vstv %s1387
        %vm1389 = vcmp.lt.s32.totalorder %v1388, %v631
        %v1390 = vsel %vm1389, 1, 0
        %1391 = vset.pattern.permute.xlu0 0
        %1392 = vperm.xlu0 %1391, %v1390
        %v1393 = vpop.permute.xlu0 %1392
        %vm1394 = vcmp.eq.s32.totalorder %v1393, 1
        %v1395 = vsel %vm1394, %v1383, 1.0
        %v1396 = vsub.f32 1.0, %v1395
        %v1397 = vmul.f32 %v1396, %v1386
        %v1398 = vmul.f32 %v1395, %v1281
        %v1399 = vadd.f32 %v1397, %v1398
        %s1400 = smul.u32 5, 3
        %s1401 = smul.addr %s1400, 8
        %s1402 = scalar_lea.vmem [#allocation3], %s1401
        %v1403 = vld [vmem:[%s1402] sm:$0xff]
        %v1404 = vld [vmem:[%s1402 + $0x8] sm:$0xff]
        %v1405 = vld [vmem:[%s1402 + $0x10] sm:$0xff]
        %v1406 = vpack.c.bf16 %v1399, %v1399
        %1407 = vmatprep.subr.bf16.mxu0 %v771
        %1408 = vmatpush1.bf16.msra.mxu0 %v770
        %1409 = vmatprep.subr.bf16.mxu0 %v774
        %1410 = vmatpush1.bf16.msra.mxu0 %v773
        %1411 = vmatprep.subr.bf16.mxu0 %v777
        %1412 = vmatpush1.bf16.msra.mxu0 %v776
        %1413 = vmatprep.subr.bf16.mxu0 %v780
        %1414 = vmatpush1.bf16.msra.mxu0 %v779
        %1415 = vmatprep.subr.bf16.mxu0 %v783
        %1416 = vmatpush1.bf16.msra.mxu0 %v782
        %1417 = vmatprep.subr.bf16.mxu0 %v786
        %1418 = vmatpush1.bf16.msra.mxu0 %v785
        %1419 = vmatprep.subr.bf16.mxu0 %v789
        %1420 = vmatpush1.bf16.msra.mxu0 %v788
        %1421 = vmatprep.subr.bf16.mxu0 %v792
        %1422 = vmatpush1.bf16.msra.mxu0 %v791
        %1423 = vmatprep.subr.bf16.mxu0 0
        %1424 = vmatpush1.bf16.msra.mxu0 0
        %1425 = vmatprep.subr.bf16.mxu0 0
        %1426 = vmatpush1.bf16.msra.mxu0 0
        %1427 = vmatprep.subr.bf16.mxu0 0
        %1428 = vmatpush1.bf16.msra.mxu0 0
        %1429 = vmatprep.subr.bf16.mxu0 0
        %1430 = vmatpush1.bf16.msra.mxu0 0
        %1431 = vmatprep.subr.bf16.mxu0 0
        %1432 = vmatpush1.bf16.msra.mxu0 0
        %1433 = vmatprep.subr.bf16.mxu0 0
        %1434 = vmatpush1.bf16.msra.mxu0 0
        %1435 = vmatprep.subr.bf16.mxu0 0
        %1436 = vmatpush1.bf16.msra.mxu0 0
        %1437 = vmatprep.subr.bf16.mxu0 0
        %1438 = vmatpush1.bf16.msra.mxu0 0
        %1439 = vmatprep.mubr.bf16.mxu0 0
        %1440 = vmatmul.mubr.bf16.gmra.mrb[0].mxu0 %v1406
        %v1441 = vpop.f32.mrb[0].mxu0
        %v1442 = vadd.f32 %v678, %v1441
        %v1443 = vpop.f32.mrb[0].mxu0
        %v1444 = vadd.f32 %v682, %v1443
        %v1445 = vpop.f32.mrb[0].mxu0
        %v1446 = vpop.f32.mrb[0].mxu0
        %1447 = vdwg.mxu0
        %1448 = vmatprep.subr.bf16.mxu0 0
        %1449 = vmatpush1.bf16.msra.mxu0 %v772
        %1450 = vmatprep.subr.bf16.mxu0 0
        %1451 = vmatpush1.bf16.msra.mxu0 %v775
        %1452 = vmatprep.subr.bf16.mxu0 0
        %1453 = vmatpush1.bf16.msra.mxu0 %v778
        %1454 = vmatprep.subr.bf16.mxu0 0
        %1455 = vmatpush1.bf16.msra.mxu0 %v781
        %1456 = vmatprep.subr.bf16.mxu0 0
        %1457 = vmatpush1.bf16.msra.mxu0 %v784
        %1458 = vmatprep.subr.bf16.mxu0 0
        %1459 = vmatpush1.bf16.msra.mxu0 %v787
        %1460 = vmatprep.subr.bf16.mxu0 0
        %1461 = vmatpush1.bf16.msra.mxu0 %v790
        %1462 = vmatprep.subr.bf16.mxu0 0
        %1463 = vmatpush1.bf16.msra.mxu0 %v793
        %1464 = vmatprep.subr.bf16.mxu0 0
        %1465 = vmatpush1.bf16.msra.mxu0 0
        %1466 = vmatprep.subr.bf16.mxu0 0
        %1467 = vmatpush1.bf16.msra.mxu0 0
        %1468 = vmatprep.subr.bf16.mxu0 0
        %1469 = vmatpush1.bf16.msra.mxu0 0
        %1470 = vmatprep.subr.bf16.mxu0 0
        %1471 = vmatpush1.bf16.msra.mxu0 0
        %1472 = vmatprep.subr.bf16.mxu0 0
        %1473 = vmatpush1.bf16.msra.mxu0 0
        %1474 = vmatprep.subr.bf16.mxu0 0
        %1475 = vmatpush1.bf16.msra.mxu0 0
        %1476 = vmatprep.subr.bf16.mxu0 0
        %1477 = vmatpush1.bf16.msra.mxu0 0
        %1478 = vmatprep.subr.bf16.mxu0 0
        %1479 = vmatpush1.bf16.msra.mxu0 0
        %1480 = vmatprep.mubr.bf16.mxu0 0
        %1481 = vmatmul.mubr.bf16.gmra.mrb[0].mxu0 %v1406
        %v1482 = vpop.f32.mrb[0].mxu0
        %v1483 = vadd.f32 %v686, %v1482
        %v1484 = vpop.f32.mrb[0].mxu0
        %v1485 = vpop.f32.mrb[0].mxu0
        %v1486 = vpop.f32.mrb[0].mxu0
        %1487 = vdwg.mxu0
        %v1488 = vadd.f32 %v1403, %v1442
        %v1489 = vxor.u32 %v1488, 2147483648
        %v1490 = vmul.f32 %v1489, 1.442695
        %v1491 = vpow.pop %v1490
        %v1492 = vadd.f32 %v1491, 1.0
        %v1493 = vrcp.pop %v1492
        %v1494 = vmul.f32 1.0, %v1493
        %v1495 = vadd.f32 %v1404, %v1444
        %v1496 = vxor.u32 %v1495, 2147483648
        %v1497 = vmul.f32 %v1496, 1.442695
        %v1498 = vpow.pop %v1497
        %v1499 = vadd.f32 %v1498, 1.0
        %v1500 = vrcp.pop %v1499
        %v1501 = vmul.f32 1.0, %v1500
        %v1502 = vmul.f32 %v1494, %v1483
        %v1503 = vadd.f32 %v1405, %v1502
        %v1504 = vtanh.pop %v1503
        %s1505 = sadd.s32 %s632, 5
        %v1506 = vstv %s1505
        %vm1507 = vcmp.lt.s32.totalorder %v1506, %v631
        %v1508 = vsel %vm1507, 1, 0
        %1509 = vset.pattern.permute.xlu0 0
        %1510 = vperm.xlu0 %1509, %v1508
        %v1511 = vpop.permute.xlu0 %1510
        %vm1512 = vcmp.eq.s32.totalorder %v1511, 1
        %v1513 = vsel %vm1512, %v1501, 1.0
        %v1514 = vsub.f32 1.0, %v1513
        %v1515 = vmul.f32 %v1514, %v1504
        %v1516 = vmul.f32 %v1513, %v1399
        %v1517 = vadd.f32 %v1515, %v1516
        %s1518 = smul.u32 6, 3
        %s1519 = smul.addr %s1518, 8
        %s1520 = scalar_lea.vmem [#allocation3], %s1519
        %v1521 = vld [vmem:[%s1520] sm:$0xff]
        %v1522 = vld [vmem:[%s1520 + $0x8] sm:$0xff]
        %v1523 = vld [vmem:[%s1520 + $0x10] sm:$0xff]
        %v1524 = vpack.c.bf16 %v1517, %v1517
        %1525 = vmatprep.subr.bf16.mxu0 %v771
        %1526 = vmatpush1.bf16.msra.mxu0 %v770
        %1527 = vmatprep.subr.bf16.mxu0 %v774
        %1528 = vmatpush1.bf16.msra.mxu0 %v773
        %1529 = vmatprep.subr.bf16.mxu0 %v777
        %1530 = vmatpush1.bf16.msra.mxu0 %v776
        %1531 = vmatprep.subr.bf16.mxu0 %v780
        %1532 = vmatpush1.bf16.msra.mxu0 %v779
        %1533 = vmatprep.subr.bf16.mxu0 %v783
        %1534 = vmatpush1.bf16.msra.mxu0 %v782
        %1535 = vmatprep.subr.bf16.mxu0 %v786
        %1536 = vmatpush1.bf16.msra.mxu0 %v785
        %1537 = vmatprep.subr.bf16.mxu0 %v789
        %1538 = vmatpush1.bf16.msra.mxu0 %v788
        %1539 = vmatprep.subr.bf16.mxu0 %v792
        %1540 = vmatpush1.bf16.msra.mxu0 %v791
        %1541 = vmatprep.subr.bf16.mxu0 0
        %1542 = vmatpush1.bf16.msra.mxu0 0
        %1543 = vmatprep.subr.bf16.mxu0 0
        %1544 = vmatpush1.bf16.msra.mxu0 0
        %1545 = vmatprep.subr.bf16.mxu0 0
        %1546 = vmatpush1.bf16.msra.mxu0 0
        %1547 = vmatprep.subr.bf16.mxu0 0
        %1548 = vmatpush1.bf16.msra.mxu0 0
        %1549 = vmatprep.subr.bf16.mxu0 0
        %1550 = vmatpush1.bf16.msra.mxu0 0
        %1551 = vmatprep.subr.bf16.mxu0 0
        %1552 = vmatpush1.bf16.msra.mxu0 0
        %1553 = vmatprep.subr.bf16.mxu0 0
        %1554 = vmatpush1.bf16.msra.mxu0 0
        %1555 = vmatprep.subr.bf16.mxu0 0
        %1556 = vmatpush1.bf16.msra.mxu0 0
        %1557 = vmatprep.mubr.bf16.mxu0 0
        %1558 = vmatmul.mubr.bf16.gmra.mrb[0].mxu0 %v1524
        %v1559 = vpop.f32.mrb[0].mxu0
        %v1560 = vadd.f32 %v678, %v1559
        %v1561 = vpop.f32.mrb[0].mxu0
        %v1562 = vadd.f32 %v682, %v1561
        %v1563 = vpop.f32.mrb[0].mxu0
        %v1564 = vpop.f32.mrb[0].mxu0
        %1565 = vdwg.mxu0
        %1566 = vmatprep.subr.bf16.mxu0 0
        %1567 = vmatpush1.bf16.msra.mxu0 %v772
        %1568 = vmatprep.subr.bf16.mxu0 0
        %1569 = vmatpush1.bf16.msra.mxu0 %v775
        %1570 = vmatprep.subr.bf16.mxu0 0
        %1571 = vmatpush1.bf16.msra.mxu0 %v778
        %1572 = vmatprep.subr.bf16.mxu0 0
        %1573 = vmatpush1.bf16.msra.mxu0 %v781
        %1574 = vmatprep.subr.bf16.mxu0 0
        %1575 = vmatpush1.bf16.msra.mxu0 %v784
        %1576 = vmatprep.subr.bf16.mxu0 0
        %1577 = vmatpush1.bf16.msra.mxu0 %v787
        %1578 = vmatprep.subr.bf16.mxu0 0
        %1579 = vmatpush1.bf16.msra.mxu0 %v790
        %1580 = vmatprep.subr.bf16.mxu0 0
        %1581 = vmatpush1.bf16.msra.mxu0 %v793
        %1582 = vmatprep.subr.bf16.mxu0 0
        %1583 = vmatpush1.bf16.msra.mxu0 0
        %1584 = vmatprep.subr.bf16.mxu0 0
        %1585 = vmatpush1.bf16.msra.mxu0 0
        %1586 = vmatprep.subr.bf16.mxu0 0
        %1587 = vmatpush1.bf16.msra.mxu0 0
        %1588 = vmatprep.subr.bf16.mxu0 0
        %1589 = vmatpush1.bf16.msra.mxu0 0
        %1590 = vmatprep.subr.bf16.mxu0 0
        %1591 = vmatpush1.bf16.msra.mxu0 0
        %1592 = vmatprep.subr.bf16.mxu0 0
        %1593 = vmatpush1.bf16.msra.mxu0 0
        %1594 = vmatprep.subr.bf16.mxu0 0
        %1595 = vmatpush1.bf16.msra.mxu0 0
        %1596 = vmatprep.subr.bf16.mxu0 0
        %1597 = vmatpush1.bf16.msra.mxu0 0
        %1598 = vmatprep.mubr.bf16.mxu0 0
        %1599 = vmatmul.mubr.bf16.gmra.mrb[0].mxu0 %v1524
        %v1600 = vpop.f32.mrb[0].mxu0
        %v1601 = vadd.f32 %v686, %v1600
        %v1602 = vpop.f32.mrb[0].mxu0
        %v1603 = vpop.f32.mrb[0].mxu0
        %v1604 = vpop.f32.mrb[0].mxu0
        %1605 = vdwg.mxu0
        %v1606 = vadd.f32 %v1521, %v1560
        %v1607 = vxor.u32 %v1606, 2147483648
        %v1608 = vmul.f32 %v1607, 1.442695
        %v1609 = vpow.pop %v1608
        %v1610 = vadd.f32 %v1609, 1.0
        %v1611 = vrcp.pop %v1610
        %v1612 = vmul.f32 1.0, %v1611
        %v1613 = vadd.f32 %v1522, %v1562
        %v1614 = vxor.u32 %v1613, 2147483648
        %v1615 = vmul.f32 %v1614, 1.442695
        %v1616 = vpow.pop %v1615
        %v1617 = vadd.f32 %v1616, 1.0
        %v1618 = vrcp.pop %v1617
        %v1619 = vmul.f32 1.0, %v1618
        %v1620 = vmul.f32 %v1612, %v1601
        %v1621 = vadd.f32 %v1523, %v1620
        %v1622 = vtanh.pop %v1621
        %s1623 = sadd.s32 %s632, 6
        %v1624 = vstv %s1623
        %vm1625 = vcmp.lt.s32.totalorder %v1624, %v631
        %v1626 = vsel %vm1625, 1, 0
        %1627 = vset.pattern.permute.xlu0 0
        %1628 = vperm.xlu0 %1627, %v1626
        %v1629 = vpop.permute.xlu0 %1628
        %vm1630 = vcmp.eq.s32.totalorder %v1629, 1
        %v1631 = vsel %vm1630, %v1619, 1.0
        %v1632 = vsub.f32 1.0, %v1631
        %v1633 = vmul.f32 %v1632, %v1622
        %v1634 = vmul.f32 %v1631, %v1517
        %v1635 = vadd.f32 %v1633, %v1634
        %s1636 = smul.u32 7, 3
        %s1637 = smul.addr %s1636, 8
        %s1638 = scalar_lea.vmem [#allocation3], %s1637
        %v1639 = vld [vmem:[%s1638] sm:$0xff]
        %v1640 = vld [vmem:[%s1638 + $0x8] sm:$0xff]
        %v1641 = vld [vmem:[%s1638 + $0x10] sm:$0xff]
        %v1642 = vpack.c.bf16 %v1635, %v1635
        %1643 = vmatprep.subr.bf16.mxu0 %v771
        %1644 = vmatpush1.bf16.msra.mxu0 %v770
        %1645 = vmatprep.subr.bf16.mxu0 %v774
        %1646 = vmatpush1.bf16.msra.mxu0 %v773
        %1647 = vmatprep.subr.bf16.mxu0 %v777
        %1648 = vmatpush1.bf16.msra.mxu0 %v776
        %1649 = vmatprep.subr.bf16.mxu0 %v780
        %1650 = vmatpush1.bf16.msra.mxu0 %v779
        %1651 = vmatprep.subr.bf16.mxu0 %v783
        %1652 = vmatpush1.bf16.msra.mxu0 %v782
        %1653 = vmatprep.subr.bf16.mxu0 %v786
        %1654 = vmatpush1.bf16.msra.mxu0 %v785
        %1655 = vmatprep.subr.bf16.mxu0 %v789
        %1656 = vmatpush1.bf16.msra.mxu0 %v788
        %1657 = vmatprep.subr.bf16.mxu0 %v792
        %1658 = vmatpush1.bf16.msra.mxu0 %v791
        %1659 = vmatprep.subr.bf16.mxu0 0
        %1660 = vmatpush1.bf16.msra.mxu0 0
        %1661 = vmatprep.subr.bf16.mxu0 0
        %1662 = vmatpush1.bf16.msra.mxu0 0
        %1663 = vmatprep.subr.bf16.mxu0 0
        %1664 = vmatpush1.bf16.msra.mxu0 0
        %1665 = vmatprep.subr.bf16.mxu0 0
        %1666 = vmatpush1.bf16.msra.mxu0 0
        %1667 = vmatprep.subr.bf16.mxu0 0
        %1668 = vmatpush1.bf16.msra.mxu0 0
        %1669 = vmatprep.subr.bf16.mxu0 0
        %1670 = vmatpush1.bf16.msra.mxu0 0
        %1671 = vmatprep.subr.bf16.mxu0 0
        %1672 = vmatpush1.bf16.msra.mxu0 0
        %1673 = vmatprep.subr.bf16.mxu0 0
        %1674 = vmatpush1.bf16.msra.mxu0 0
        %1675 = vmatprep.mubr.bf16.mxu0 0
        %1676 = vmatmul.mubr.bf16.gmra.mrb[0].mxu0 %v1642
        %v1677 = vpop.f32.mrb[0].mxu0
        %v1678 = vadd.f32 %v678, %v1677
        %v1679 = vpop.f32.mrb[0].mxu0
        %v1680 = vadd.f32 %v682, %v1679
        %v1681 = vpop.f32.mrb[0].mxu0
        %v1682 = vpop.f32.mrb[0].mxu0
        %1683 = vdwg.mxu0
        %1684 = vmatprep.subr.bf16.mxu0 0
        %1685 = vmatpush1.bf16.msra.mxu0 %v772
        %1686 = vmatprep.subr.bf16.mxu0 0
        %1687 = vmatpush1.bf16.msra.mxu0 %v775
        %1688 = vmatprep.subr.bf16.mxu0 0
        %1689 = vmatpush1.bf16.msra.mxu0 %v778
        %1690 = vmatprep.subr.bf16.mxu0 0
        %1691 = vmatpush1.bf16.msra.mxu0 %v781
        %1692 = vmatprep.subr.bf16.mxu0 0
        %1693 = vmatpush1.bf16.msra.mxu0 %v784
        %1694 = vmatprep.subr.bf16.mxu0 0
        %1695 = vmatpush1.bf16.msra.mxu0 %v787
        %1696 = vmatprep.subr.bf16.mxu0 0
        %1697 = vmatpush1.bf16.msra.mxu0 %v790
        %1698 = vmatprep.subr.bf16.mxu0 0
        %1699 = vmatpush1.bf16.msra.mxu0 %v793
        %1700 = vmatprep.subr.bf16.mxu0 0
        %1701 = vmatpush1.bf16.msra.mxu0 0
        %1702 = vmatprep.subr.bf16.mxu0 0
        %1703 = vmatpush1.bf16.msra.mxu0 0
        %1704 = vmatprep.subr.bf16.mxu0 0
        %1705 = vmatpush1.bf16.msra.mxu0 0
        %1706 = vmatprep.subr.bf16.mxu0 0
        %1707 = vmatpush1.bf16.msra.mxu0 0
        %1708 = vmatprep.subr.bf16.mxu0 0
        %1709 = vmatpush1.bf16.msra.mxu0 0
        %1710 = vmatprep.subr.bf16.mxu0 0
        %1711 = vmatpush1.bf16.msra.mxu0 0
        %1712 = vmatprep.subr.bf16.mxu0 0
        %1713 = vmatpush1.bf16.msra.mxu0 0
        %1714 = vmatprep.subr.bf16.mxu0 0
        %1715 = vmatpush1.bf16.msra.mxu0 0
        %1716 = vmatprep.mubr.bf16.mxu0 0
        %1717 = vmatmul.mubr.bf16.gmra.mrb[0].mxu0 %v1642
        %v1718 = vpop.f32.mrb[0].mxu0
        %v1719 = vadd.f32 %v686, %v1718
        %v1720 = vpop.f32.mrb[0].mxu0
        %v1721 = vpop.f32.mrb[0].mxu0
        %v1722 = vpop.f32.mrb[0].mxu0
        %1723 = vdwg.mxu0
        %v1724 = vadd.f32 %v1639, %v1678
        %v1725 = vxor.u32 %v1724, 2147483648
        %v1726 = vmul.f32 %v1725, 1.442695
        %v1727 = vpow.pop %v1726
        %v1728 = vadd.f32 %v1727, 1.0
        %v1729 = vrcp.pop %v1728
        %v1730 = vmul.f32 1.0, %v1729
        %v1731 = vadd.f32 %v1640, %v1680
        %v1732 = vxor.u32 %v1731, 2147483648
        %v1733 = vmul.f32 %v1732, 1.442695
        %v1734 = vpow.pop %v1733
        %v1735 = vadd.f32 %v1734, 1.0
        %v1736 = vrcp.pop %v1735
        %v1737 = vmul.f32 1.0, %v1736
        %v1738 = vmul.f32 %v1730, %v1719
        %v1739 = vadd.f32 %v1641, %v1738
        %v1740 = vtanh.pop %v1739
        %s1741 = sadd.s32 %s632, 7
        %v1742 = vstv %s1741
        %vm1743 = vcmp.lt.s32.totalorder %v1742, %v631
        %v1744 = vsel %vm1743, 1, 0
        %1745 = vset.pattern.permute.xlu0 0
        %1746 = vperm.xlu0 %1745, %v1744
        %v1747 = vpop.permute.xlu0 %1746
        %vm1748 = vcmp.eq.s32.totalorder %v1747, 1
        %v1749 = vsel %vm1748, %v1737, 1.0
        %v1750 = vsub.f32 1.0, %v1749
        %v1751 = vmul.f32 %v1750, %v1740
        %v1752 = vmul.f32 %v1749, %v1635
        %v1753 = vadd.f32 %v1751, %v1752
        %1754 = vst [vmem:[#allocation2] sm:$0xff] %v1753
        %p1755 = scmp.eq.s32.totalorder %s27, 1
        // Predicated region
        $region61: #{tpu_custom_call.1} parent=43 // pred_check
          %p1756 = pneg %p1755
        $region62: #{tpu_custom_call.1} parent=43 // pred_check_branch
          %1758 = sbr.rel (%p1756) target = $region64
        $region63: #{tpu_custom_call.1} parent=43 // pred_region
          %v1759 = vld [vmem:[#allocation2] sm:$0xff]
          %1760 = vst [vmem:[#allocation10] sm:$0xff] %v1759
        $region64: #{tpu_custom_call.1} parent=43 // pred_fallthru
          _
        // Predicated region
        $region65: #{tpu_custom_call.1} parent=43 // pred_check
          %p1761 = pneg %p190
        $region66: #{tpu_custom_call.1} parent=43 // pred_check_branch
          %1763 = sbr.rel (%p1761) target = $region68
        $region67: #{tpu_custom_call.1} parent=43 // pred_region
          %s1765 = ssub.s32 128, 128
          %1766 = vsyncadd [#allocation6], %s1765
          %s1767 = smul.addr %s26, 128
          %s1768 = scalar_lea.hbm %s6, %s1767
          %s1770 = sshll.u32 [#allocation10], 4
          %s1771 = int_to_ptr.vmem [resolvable:$true] %s1770
          %1773 = dma.vmem_to_hbm [thread:$0]  %s1771, 128, %s1768, [#allocation6]
        $region68: #{tpu_custom_call.1} parent=43 // pred_fallthru
          _
        // Predicated region
        $region69: #{tpu_custom_call.1} parent=43 // pred_check
          %p1774 = pneg %p190
        $region70: #{tpu_custom_call.1} parent=43 // pred_check_branch
          %1776 = sbr.rel (%p1774) target = $region72
        $region71: #{tpu_custom_call.1} parent=43 // pred_region
          %1777 = dma.done [#allocation6], 128
        $region72: #{tpu_custom_call.1} parent=43 // pred_fallthru
          _
      $region44: #{tpu_custom_call.1} parent=5 // pred_fallthru
        _
      %p1778 = scmp.le.s32.totalorder 2, %s17
      // Predicated region
      $region73: #{tpu_custom_call.1} parent=5 // pred_check
        %p1779 = pneg %p1778
      $region74: #{tpu_custom_call.1} parent=5 // pred_check_branch
        %1781 = sbr.rel (%p1779) target = $region76
      $region75: #{tpu_custom_call.1} parent=5 // pred_region
        %s1782 = ssub.s32 %s17, 2
      $region76: #{tpu_custom_call.1} parent=5 // pred_fallthru
        _
    $region6: #{tpu_custom_call.1} parent=1 // loop_footer
      %s21 = sadd.s32 1, %s17
    $region7: #{tpu_custom_call.1} parent=1 // loop_footer_branch
      %16 = sbr.rel target = $region3
    $region8: #{tpu_custom_call.1} parent=1 // loop_exit
      _
    %1783 = vsyncpa [#allocation5], 1
    %s1784 = scalar_lea.sflag [#allocation5], 1
    %1785 = vsyncpa %s1784, 1
    %1786 = vsyncpa [#allocation8], 1
    %1787 = vsyncpa [#allocation6], 1
    %s1788 = scalar_lea.sflag [#allocation6], 1
    %1789 = vsyncpa %s1788, 1

</llo_original>
